<compile_context>
chip_gen: v7x
topology: tpu7x:2x2x1
jax: 0.10.0
libtpu: 0.0.40
codegen_flags: <defaults>
</compile_context>

<pallas_src>
import functools
import math

import jax
import jax.numpy as jnp
from jax import lax
from jax.experimental import pallas as pl
from jax.experimental.pallas import tpu as pltpu

_HALF_LOG_2PI = 0.9189385332046727  # 0.5*log(2*pi)
_TM_MAX, _TN_MAX, _TK_MAX = 256, 256, 1024


def _round_up(x, m):
    return (x + m - 1) // m * m


def _gemm_pad_dims(k, n):
    """Padded (K, N) dims + tiles for the backbone GEMM (batch-independent)."""
    tn = min(_TN_MAX, _round_up(n, 128))
    tk = min(_TK_MAX, _round_up(k, 128))
    return _round_up(k, tk), _round_up(n, tn), tk, tn


# ----------------------------------------------------------------------------
# In-kernel special functions (arguments are always >= 1 here: alpha = ev + 1).
# ----------------------------------------------------------------------------
def _lgamma(x):
    # Recurrence shift by 7 using ONE log of the running product, then the
    # Stirling series at z = x + 7 >= 8.  The approx reciprocal only feeds the
    # O(1e-2) correction terms.
    prod = x
    z = x
    for _ in range(6):
        z = z + 1.0
        prod = prod * z
    z = z + 1.0
    zi = pl.reciprocal(z, approx=True)
    zi2 = zi * zi
    series = zi * (1.0 / 12.0) - (zi2 * zi) * (1.0 / 360.0) \
        + (zi2 * zi2 * zi) * (1.0 / 1260.0)
    return (z - 0.5) * jnp.log(z) - z + _HALF_LOG_2PI + series - jnp.log(prod)


def _digamma(x):
    # Keep the 7 recurrence divides exact (loss-sensitive); approx reciprocal
    # only for the asymptotic tail.
    shift = jnp.zeros_like(x)
    z = x
    for _ in range(7):
        shift = shift + 1.0 / z
        z = z + 1.0
    zi = pl.reciprocal(z, approx=True)
    zi2 = zi * zi
    dg = jnp.log(z) - 0.5 * zi - zi2 * (
        1.0 / 12.0 - zi2 * (1.0 / 120.0 - zi2 * (1.0 / 252.0)))
    return dg - shift


# ----------------------------------------------------------------------------
# Kernel 1: tiled linear (image backbone stand-in), bf16 MXU matmul, bf16 out.
# ----------------------------------------------------------------------------
def _linear_kernel(x_ref, w_ref, b_ref, o_ref, acc_ref):
    @pl.when(pl.program_id(2) == 0)
    def _init():
        acc_ref[...] = jnp.zeros_like(acc_ref)

    acc_ref[...] += jnp.dot(x_ref[...], w_ref[...],
                            preferred_element_type=jnp.float32)

    @pl.when(pl.program_id(2) == pl.num_programs(2) - 1)
    def _finalize():
        o_ref[...] = (acc_ref[...] + b_ref[...]).astype(o_ref.dtype)


def pallas_linear_prepacked(x, w_p, b_p):
    """pad(x) @ w_p + b_p with a tiled, pipelined Pallas matmul.

    w_p / b_p are pre-padded & pre-cast at module init (no per-forward weight
    copies).  The bf16 output is kept in its padded layout for the head kernel.
    """
    m, k = x.shape
    kp, np_ = w_p.shape
    # Tiles re-derived from the padded dims are consistent with _gemm_pad_dims
    # (kp / np_ are either below the cap or a multiple of it).
    tk = min(_TK_MAX, kp)
    tn = min(_TN_MAX, np_)
    tm = min(_TM_MAX, _round_up(m, 16))          # 16: bf16 packs 2 rows/sublane
    mp = _round_up(m, tm)

    x_p = jnp.pad(x, ((0, mp - m), (0, kp - k))).astype(jnp.bfloat16)

    # Explicit VMEM budget (double-buffered bf16 inputs + bf16 out + f32 acc):
    # valid on v7x's 64 MiB as well as v5e/v6e's 128 MiB.
    vmem_need = (2 * (tm * tk + tk * tn) * 2 + 2 * tm * tn * 2
                 + tm * tn * 4 + 2 * tn * 4)
    vmem_limit = int(min(100 * 1024 * 1024, max(16 * 1024 * 1024, 2 * vmem_need)))

    # TODO(synk): when mp//tm == np_//tn == 1 (tiny batch & hidden) there are
    #             no parallel grid blocks, so one v7x TensorCore idles; split
    #             K into two parallel partial sums if that regime matters.
    out = pl.pallas_call(
        _linear_kernel,
        out_shape=jax.ShapeDtypeStruct((mp, np_), jnp.bfloat16),
        grid_spec=pltpu.PrefetchScalarGridSpec(
            num_scalar_prefetch=0,
            grid=(mp // tm, np_ // tn, kp // tk),
            in_specs=[pl.BlockSpec((tm, tk), lambda i, j, kk: (i, kk)),
                      pl.BlockSpec((tk, tn), lambda i, j, kk: (kk, j)),
                      pl.BlockSpec((1, tn), lambda i, j, kk: (0, j))],
            out_specs=pl.BlockSpec((tm, tn), lambda i, j, kk: (i, j)),
            scratch_shapes=[pltpu.VMEM((tm, tn), jnp.float32)]),
        compiler_params=pltpu.CompilerParams(
            dimension_semantics=("parallel", "parallel", "arbitrary"),
            vmem_limit_bytes=vmem_limit),
    )(x_p, w_p, b_p)
    return out                                   # padded (mp, np_) bf16


# ----------------------------------------------------------------------------
# Kernel 2: fused classifier head + softplus + TMC fusion (ce_loss/KL/DS/sigmoid)
# ----------------------------------------------------------------------------
def _cls_tmc_kernel(coef_ref, feat_ref, w_ref, b_ref, label_ref,
                    loss_ref, pred_ref, *, num_labels, batch, binary_labels):
    coef = coef_ref[0]
    rows, lp = label_ref.shape
    inv_k = 1.0 / float(num_labels)
    lgamma_k = float(math.lgamma(float(num_labels)))   # folded at trace time

    # classifier head: evidence = softplus(feat @ w + b)   (stable softplus)
    y = (jnp.dot(feat_ref[...], w_ref[...],
                 preferred_element_type=jnp.float32) + b_ref[...])
    ev = jnp.maximum(y, 0.0) + jnp.log(1.0 + jnp.exp(-jnp.abs(y)))

    lane = lax.broadcasted_iota(jnp.int32, (rows, lp), 1)
    valid = (lane < num_labels).astype(jnp.float32)     # lane-padding mask
    row = lax.broadcasted_iota(jnp.int32, (rows, 1), 0)
    row_valid = (row < batch).astype(jnp.float32)       # row-padding mask

    ev = ev * valid                  # padded lanes -> evidence 0, alpha 1
    p = label_ref[...]               # padded lanes / rows are already 0
    one_m_p = 1.0 - p

    def msum(v):                     # masked row-sum over the real labels
        return jnp.sum(v * valid, axis=1, keepdims=True)

    # ---- Dirichlet parameters ---------------------------------------------
    alpha0 = ev + 1.0
    # DS_Combin_two(alpha0, alpha0) reduces algebraically to
    #   e_a = ev^2 / K + 2 * ev    (the (1 - C) denominators cancel exactly),
    # valid because the reference forward sets evidence[0] == evidence[1].
    # TODO(synk): use the general DS_Combin_two if the two views ever differ.
    e_a = ev * ev * inv_k + 2.0 * ev
    alpha_a = e_a + 1.0

    alp0 = ev * one_m_p + 1.0        # (alpha - 1) * (1 - p) + 1
    alp_a = e_a * one_m_p + 1.0

    # ---- transcendentals ----------------------------------------------------
    dg_a0 = _digamma(alpha0)
    lg_a0 = _lgamma(alpha0)
    dg_aa = _digamma(alpha_a)
    lg_aa = _lgamma(alpha_a)

    # Pack all per-row scalar arguments into lanes of ONE tensor per function
    # so the six narrow [B,1] digamma/lgamma passes collapse into two passes.
    S0, Salp0 = msum(alpha0), msum(alp0)
    Sa, Salpa = msum(alpha_a), msum(alp_a)

    def pack(vals):
        acc = jnp.ones((rows, lp), jnp.float32)   # benign fill (dg/lg finite)
        for i, v in enumerate(vals):
            acc = jnp.where(lane == i, v, acc)
        return acc

    def pick(x, i):
        return jnp.sum(jnp.where(lane == i, x, 0.0), axis=1, keepdims=True)

    dg_pack = _digamma(pack([S0, Salp0, Sa, Salpa]))
    lg_pack = _lgamma(pack([Salp0, Salpa]))
    dgS0, dgSalp0 = pick(dg_pack, 0), pick(dg_pack, 1)
    dgSa, dgSalpa = pick(dg_pack, 2), pick(dg_pack, 3)
    lgSalp0, lgSalpa = pick(lg_pack, 0), pick(lg_pack, 1)

    # ---- ce_loss = A + coef * KL(alp) ---------------------------------------
    def ce(ev_v, alp_v, dg_alpha, lg_alpha, dgS, dgSalp, lgSalp):
        a_term = msum(p * (dgS - dg_alpha))
        if binary_labels:
            # p in {0,1}: digamma/lgamma(alp) reuse digamma/lgamma(alpha)
            # (when p==1 the (alp-1) factor is 0 and lgamma(1) = 0).
            kl_dg = msum(one_m_p * ev_v * (dg_alpha - dgSalp))
            lg_alp_sum = msum(one_m_p * lg_alpha)
        else:
            kl_dg = msum((alp_v - 1.0) * (_digamma(alp_v) - dgSalp))
            lg_alp_sum = msum(_lgamma(alp_v))
        # lnB_uni = sum(lgamma(ones)) - lgamma(K) = -lgamma(K)
        kl = kl_dg + lgSalp - lg_alp_sum - lgamma_k
        return a_term + coef * kl

    loss0 = ce(ev, alp0, dg_a0, lg_a0, dgS0, dgSalp0, lgSalp0)
    loss_a = ce(e_a, alp_a, dg_aa, lg_aa, dgSa, dgSalpa, lgSalpa)

    # evidence[0] == evidence[1] in the reference forward -> loss0 is doubled.
    per_row = 2.0 * loss0 + loss_a
    loss_ref[...] = jnp.sum(per_row * row_valid, axis=0,
                            keepdims=True) * (1.0 / float(batch))
    pred_ref[...] = 0.5 * (jnp.tanh(0.5 * e_a) + 1.0)   # sigmoid(e_a) via EUP tanh


def tmc_head_and_fuse(feat_p, w_cls_p, b_cls_p, label, coef, *,
                      num_labels, batch, binary_labels=True):
    # TODO(synk): for large batch, grid this kernel over rows (e.g. tb=256)
    #             with per-block partial losses summed outside ('parallel' B).
    rows, _ = feat_p.shape
    lp = w_cls_p.shape[1]
    lab_p = jnp.pad(label.astype(jnp.float32),
                    ((0, rows - batch), (0, lp - num_labels)))

    kern = functools.partial(_cls_tmc_kernel, num_labels=num_labels,
                             batch=batch, binary_labels=binary_labels)
    loss, pred_p = pl.pallas_call(
        kern,
        out_shape=(jax.ShapeDtypeStruct((1, 1), jnp.float32),
                   jax.ShapeDtypeStruct((rows, lp), jnp.float32)),
        in_specs=[pl.BlockSpec(memory_space=pltpu.MemorySpace.SMEM),
                  pl.BlockSpec(memory_space=pltpu.MemorySpace.VMEM),
                  pl.BlockSpec(memory_space=pltpu.MemorySpace.VMEM),
                  pl.BlockSpec(memory_space=pltpu.MemorySpace.VMEM),
                  pl.BlockSpec(memory_space=pltpu.MemorySpace.VMEM)],
        out_specs=(pl.BlockSpec(memory_space=pltpu.MemorySpace.VMEM),
                   pl.BlockSpec(memory_space=pltpu.MemorySpace.VMEM)),
    )(coef, feat_p, w_cls_p, b_cls_p, lab_p)
    return loss[0, 0], pred_p[:batch, :num_labels]


# ----------------------------------------------------------------------------
# Module wrapper
# ----------------------------------------------------------------------------
class TMCFusionPallas:
    """JAX/Pallas re-implementation of TMCFusion.forward."""

    def __init__(self, key, *, image_shape, seq_len, word_dim, vocab_size,
                 hidden_dim, num_labels, lambda_epochs):
        del seq_len
        self.num_labels = num_labels
        self.hidden_dim = hidden_dim
        self.lambda_epochs = lambda_epochs
        c, h, w = image_shape
        d_img = c * h * w
        ks = jax.random.split(key, 5)
        s = 0.05
        w_img = s * jax.random.normal(ks[0], (d_img, hidden_dim), jnp.float32)
        b_img = jnp.zeros((1, hidden_dim), jnp.float32)
        w_cls = s * jax.random.normal(ks[1], (hidden_dim, num_labels), jnp.float32)
        b_cls = jnp.zeros((1, num_labels), jnp.float32)

        # Pre-pad + pre-cast all Pallas-side weights ONCE (no per-forward copies).
        kp, hp, _, _ = _gemm_pad_dims(d_img, hidden_dim)
        lp = _round_up(num_labels, 128)
        self.w_img_p = jnp.pad(
            w_img, ((0, kp - d_img), (0, hp - hidden_dim))).astype(jnp.bfloat16)
        self.b_img_p = jnp.pad(
            b_img, ((0, 0), (0, hp - hidden_dim))).astype(jnp.float32)
        self.w_cls_p = jnp.pad(
            w_cls, ((0, hp - hidden_dim), (0, lp - num_labels))).astype(jnp.bfloat16)
        self.b_cls_p = jnp.pad(
            b_cls, ((0, 0), (0, lp - num_labels))).astype(jnp.float32)

        # Text backbone stand-in (plain XLA; its classifier output is never
        # consumed by the reference forward, so no text head is built).
        self.emb = s * jax.random.normal(ks[2], (vocab_size, word_dim), jnp.float32)
        self.w_txt = s * jax.random.normal(ks[3], (word_dim, hidden_dim), jnp.float32)
        self.b_txt = jnp.zeros((1, hidden_dim), jnp.float32)
        self._forward = jax.jit(self._forward_impl)

    def _forward_impl(self, image, text, label, coef):
        bsz = image.shape[0]
        x_flat = image.reshape(bsz, -1).astype(jnp.float32)   # NCHW row-major flatten

        # image backbone stand-in: tiled, double-buffered bf16 Pallas matmul;
        # its padded bf16 output feeds the fused head kernel directly.
        feat_p = pallas_linear_prepacked(x_flat, self.w_img_p, self.b_img_p)
        img_feature = feat_p[:bsz, :self.hidden_dim].astype(jnp.float32)

        # text backbone stand-in: far below one MXU tile -> plain XLA dot
        # (a separate pallas_call would be pure launch/DMA overhead).
        emb = jnp.take(self.emb, text, axis=0)                 # [B, L, word_dim]
        txt_pooled = jnp.mean(emb, axis=1)                     # [B, word_dim]
        txt_feature = txt_pooled @ self.w_txt + self.b_txt

        # fused classifier head + TMC evidence fusion
        loss, predict = tmc_head_and_fuse(
            feat_p, self.w_cls_p, self.b_cls_p, label, coef,
            num_labels=self.num_labels, batch=bsz, binary_labels=True)
        return {'loss': loss, 'logit': predict,
                'img_feature': img_feature, 'txt_feature': txt_feature}

    def __call__(self, batch):
        annealing_coef = min(1.0, float(batch['epoch']) / float(self.lambda_epochs))
        coef = jnp.full((1,), annealing_coef, jnp.float32)
        return self._forward(batch['image'], batch['text'],
                             batch['label'].astype(jnp.float32), coef)


if __name__ == "__main__":
    key = jax.random.PRNGKey(0)
    k_img, k_txt, k_lab, k_par = jax.random.split(key, 4)

    B, C, H, W = 2, 4, 16, 16
    L, VOCAB, WORD_DIM, HIDDEN, K = 8, 32, 16, 32, 4
    LAMBDA_EPOCHS = 10

    batch = {
        'image': jax.random.normal(k_img, (B, C, H, W), jnp.float32),
        'text': jax.random.randint(k_txt, (B, L), 0, VOCAB),
        'label': jax.random.bernoulli(k_lab, 0.5, (B, K)).astype(jnp.float32),
        'epoch': 3,
    }

    model = TMCFusionPallas(k_par,
                            image_shape=(C, H, W), seq_len=L,
                            word_dim=WORD_DIM, vocab_size=VOCAB,
                            hidden_dim=HIDDEN, num_labels=K,
                            lambda_epochs=LAMBDA_EPOCHS)

    out = model(batch)
    jax.block_until_ready(out['loss'])
    jax.block_until_ready(out['logit'])
    jax.block_until_ready(out['img_feature'])
    jax.block_until_ready(out['txt_feature'])
    print("KERNEL_OK")
</pallas_src>

<mosaic_0001>
module attributes {stable_mosaic.version = 11 : i64} {
  func.func @_linear_kernel(%arg0: i32, %arg1: i32, %arg2: i32, %arg3: memref<16x1024xbf16, #tpu.memory_space<vmem>>, %arg4: memref<1024x128xbf16, #tpu.memory_space<vmem>>, %arg5: memref<1x128xf32, #tpu.memory_space<vmem>>, %arg6: memref<16x128xbf16, #tpu.memory_space<vmem>>, %arg7: memref<16x128xf32, #tpu.memory_space<vmem>>) attributes {dimension_semantics = [#tpu.dimension_semantics<parallel>, #tpu.dimension_semantics<parallel>, #tpu.dimension_semantics<arbitrary>], iteration_bounds = array<i64: 1, 1, 1>, scalar_prefetch = 0 : i64, scratch_operands = 1 : i64, tpu.core_type = #tpu.core_type<tc>, window_params = [{transform_indices = @transform_0, window_bounds = array<i64: 16, 1024>}, {transform_indices = @transform_1, window_bounds = array<i64: 1024, 128>}, {transform_indices = @transform_2, window_bounds = array<i64: 1, 128>}, {transform_indices = @transform_3, window_bounds = array<i64: 16, 128>}]} {
    %c0_i32 = arith.constant 0 : i32
    %0 = arith.cmpi eq, %arg2, %c0_i32 : i32
    %1 = arith.extui %0 : i1 to i32
    %c0_i32_0 = arith.constant 0 : i32
    %2 = arith.cmpi ne, %1, %c0_i32_0 : i32
    scf.if %2 {
      %cst_10 = arith.constant 0.000000e+00 : f32
      %12 = vector.broadcast %cst_10 : f32 to vector<16x128xf32>
      %c0_11 = arith.constant 0 : index
      %c0_12 = arith.constant 0 : index
      %13 = vector.load %arg7[%c0_11, %c0_12] : memref<16x128xf32, #tpu.memory_space<vmem>>, vector<16x128xf32>
      tpu.vector_store %arg7[%c0_11, %c0_12], %12 {strides = array<i32>} : memref<16x128xf32, #tpu.memory_space<vmem>>, vector<16x128xf32>,
    } else {
    }
    %c0 = arith.constant 0 : index
    %c0_1 = arith.constant 0 : index
    %3 = vector.load %arg7[%c0, %c0_1] : memref<16x128xf32, #tpu.memory_space<vmem>>, vector<16x128xf32>
    %c0_2 = arith.constant 0 : index
    %c0_3 = arith.constant 0 : index
    %4 = vector.load %arg3[%c0_2, %c0_3] : memref<16x1024xbf16, #tpu.memory_space<vmem>>, vector<16x1024xbf16>
    %c0_4 = arith.constant 0 : index
    %c0_5 = arith.constant 0 : index
    %5 = vector.load %arg4[%c0_4, %c0_5] : memref<1024x128xbf16, #tpu.memory_space<vmem>>, vector<1024x128xbf16>
    %cst = arith.constant dense<0.000000e+00> : vector<16x128xf32>
    %6 = tpu.matmul %4, %5, %cst {dimension_numbers = #tpu.dot_dimension_numbers<[1], [0], [0], [1], [0, 0, 1, 1], [], []>} : vector<16x1024xbf16>, vector<1024x128xbf16>, vector<16x128xf32> -> vector<16x128xf32>
    %7 = arith.addf %3, %6 : vector<16x128xf32>
    %c0_6 = arith.constant 0 : index
    %c0_7 = arith.constant 0 : index
    %8 = vector.load %arg7[%c0_6, %c0_7] : memref<16x128xf32, #tpu.memory_space<vmem>>, vector<16x128xf32>
    tpu.vector_store %arg7[%c0_6, %c0_7], %7 {strides = array<i32>} : memref<16x128xf32, #tpu.memory_space<vmem>>, vector<16x128xf32>,
    %c0_i32_8 = arith.constant 0 : i32
    %9 = arith.cmpi eq, %arg2, %c0_i32_8 : i32
    %10 = arith.extui %9 : i1 to i32
    %c0_i32_9 = arith.constant 0 : i32
    %11 = arith.cmpi ne, %10, %c0_i32_9 : i32
    scf.if %11 {
      %c0_10 = arith.constant 0 : index
      %c0_11 = arith.constant 0 : index
      %12 = vector.load %arg7[%c0_10, %c0_11] : memref<16x128xf32, #tpu.memory_space<vmem>>, vector<16x128xf32>
      %c0_12 = arith.constant 0 : index
      %c0_13 = arith.constant 0 : index
      %13 = vector.load %arg5[%c0_12, %c0_13] : memref<1x128xf32, #tpu.memory_space<vmem>>, vector<1x128xf32>
      %14 = vector.broadcast %13 : vector<1x128xf32> to vector<16x128xf32>
      %15 = arith.addf %12, %14 : vector<16x128xf32>
      %16 = arith.truncf %15 : vector<16x128xf32> to vector<16x128xbf16>
      %c0_14 = arith.constant 0 : index
      %c0_15 = arith.constant 0 : index
      %17 = vector.load %arg6[%c0_14, %c0_15] : memref<16x128xbf16, #tpu.memory_space<vmem>>, vector<16x128xbf16>
      tpu.vector_store %arg6[%c0_14, %c0_15], %16 {strides = array<i32>} : memref<16x128xbf16, #tpu.memory_space<vmem>>, vector<16x128xbf16>,
    } else {
    }
    return
  }
  func.func @transform_0(%arg0: i32, %arg1: i32, %arg2: i32) -> (i32, i32) {
    %c0_i32 = arith.constant 0 : i32
    return %arg0, %arg2 : i32, i32
  }
  func.func @transform_1(%arg0: i32, %arg1: i32, %arg2: i32) -> (i32, i32) {
    %c0_i32 = arith.constant 0 : i32
    return %arg2, %arg1 : i32, i32
  }
  func.func @transform_2(%arg0: i32, %arg1: i32, %arg2: i32) -> (i32, i32) {
    %c0_i32 = arith.constant 0 : i32
    %c0_i32_0 = arith.constant 0 : i32
    return %c0_i32, %arg1 : i32, i32
  }
  func.func @transform_3(%arg0: i32, %arg1: i32, %arg2: i32) -> (i32, i32) {
    %c0_i32 = arith.constant 0 : i32
    return %arg0, %arg1 : i32, i32
  }
}

module attributes {stable_mosaic.version = 11 : i64} {
  func.func @_cls_tmc_kernel(%arg0: memref<1xf32, #tpu.memory_space<smem>>, %arg1: memref<16x128xbf16, #tpu.memory_space<vmem>>, %arg2: memref<128x128xbf16, #tpu.memory_space<vmem>>, %arg3: memref<1x128xf32, #tpu.memory_space<vmem>>, %arg4: memref<16x128xf32, #tpu.memory_space<vmem>>, %arg5: memref<1x1xf32, #tpu.memory_space<vmem>>, %arg6: memref<16x128xf32, #tpu.memory_space<vmem>>) attributes {dimension_semantics = [], scalar_prefetch = 0 : i64, scratch_operands = 0 : i64, tpu.core_type = #tpu.core_type<tc>} {
    %c0 = arith.constant 0 : index
    %0 = memref.load %arg0[%c0] : memref<1xf32, #tpu.memory_space<smem>>
    %c0_0 = arith.constant 0 : index
    %c0_1 = arith.constant 0 : index
    %1 = vector.load %arg1[%c0_0, %c0_1] : memref<16x128xbf16, #tpu.memory_space<vmem>>, vector<16x128xbf16>
    %c0_2 = arith.constant 0 : index
    %c0_3 = arith.constant 0 : index
    %2 = vector.load %arg2[%c0_2, %c0_3] : memref<128x128xbf16, #tpu.memory_space<vmem>>, vector<128x128xbf16>
    %cst = arith.constant dense<0.000000e+00> : vector<16x128xf32>
    %3 = tpu.matmul %1, %2, %cst {dimension_numbers = #tpu.dot_dimension_numbers<[1], [0], [0], [1], [0, 0, 1, 1], [], []>} : vector<16x128xbf16>, vector<128x128xbf16>, vector<16x128xf32> -> vector<16x128xf32>
    %c0_4 = arith.constant 0 : index
    %c0_5 = arith.constant 0 : index
    %4 = vector.load %arg3[%c0_4, %c0_5] : memref<1x128xf32, #tpu.memory_space<vmem>>, vector<1x128xf32>
    %5 = vector.broadcast %4 : vector<1x128xf32> to vector<16x128xf32>
    %6 = arith.addf %3, %5 : vector<16x128xf32>
    %cst_6 = arith.constant 0.000000e+00 : f32
    %7 = vector.broadcast %cst_6 : f32 to vector<16x128xf32>
    %8 = arith.maximumf %6, %7 : vector<16x128xf32>
    %9 = math.absf %6 : vector<16x128xf32>
    %cst_7 = arith.constant 0.000000e+00 : f32
    %10 = vector.broadcast %cst_7 : f32 to vector<16x128xf32>
    %11 = arith.subf %10, %9 : vector<16x128xf32>
    %12 = math.exp %11 : vector<16x128xf32>
    %cst_8 = arith.constant 1.000000e+00 : f32
    %13 = vector.broadcast %cst_8 : f32 to vector<16x128xf32>
    %14 = arith.addf %13, %12 : vector<16x128xf32>
    %15 = math.log %14 : vector<16x128xf32>
    %16 = arith.addf %8, %15 : vector<16x128xf32>
    %17 = tpu.iota {dimensions = array<i32: 1>} : vector<16x128xi32>
    %c4_i32 = arith.constant 4 : i32
    %18 = vector.broadcast %c4_i32 : i32 to vector<16x128xi32>
    %19 = arith.cmpi slt, %17, %18 : vector<16x128xi32>
    %20 = arith.extui %19 : vector<16x128xi1> to vector<16x128xi32>
    %21 = arith.sitofp %20 : vector<16x128xi32> to vector<16x128xf32>
    %22 = tpu.iota {dimensions = array<i32: 0>} : vector<16x1xi32>
    %c2_i32 = arith.constant 2 : i32
    %23 = vector.broadcast %c2_i32 : i32 to vector<16x1xi32>
    %24 = arith.cmpi slt, %22, %23 : vector<16x1xi32>
    %25 = arith.extui %24 : vector<16x1xi1> to vector<16x1xi32>
    %26 = arith.sitofp %25 : vector<16x1xi32> to vector<16x1xf32>
    %27 = arith.mulf %16, %21 : vector<16x128xf32>
    %c0_9 = arith.constant 0 : index
    %c0_10 = arith.constant 0 : index
    %28 = vector.load %arg4[%c0_9, %c0_10] : memref<16x128xf32, #tpu.memory_space<vmem>>, vector<16x128xf32>
    %cst_11 = arith.constant 1.000000e+00 : f32
    %29 = vector.broadcast %cst_11 : f32 to vector<16x128xf32>
    %30 = arith.subf %29, %28 : vector<16x128xf32>
    %cst_12 = arith.constant 1.000000e+00 : f32
    %31 = vector.broadcast %cst_12 : f32 to vector<16x128xf32>
    %32 = arith.addf %27, %31 : vector<16x128xf32>
    %33 = arith.mulf %27, %27 : vector<16x128xf32>
    %cst_13 = arith.constant 2.500000e-01 : f32
    %34 = vector.broadcast %cst_13 : f32 to vector<16x128xf32>
    %35 = arith.mulf %33, %34 : vector<16x128xf32>
    %cst_14 = arith.constant 2.000000e+00 : f32
    %36 = vector.broadcast %cst_14 : f32 to vector<16x128xf32>
    %37 = arith.mulf %36, %27 : vector<16x128xf32>
    %38 = arith.addf %35, %37 : vector<16x128xf32>
    %cst_15 = arith.constant 1.000000e+00 : f32
    %39 = vector.broadcast %cst_15 : f32 to vector<16x128xf32>
    %40 = arith.addf %38, %39 : vector<16x128xf32>
    %41 = arith.mulf %27, %30 : vector<16x128xf32>
    %cst_16 = arith.constant 1.000000e+00 : f32
    %42 = vector.broadcast %cst_16 : f32 to vector<16x128xf32>
    %43 = arith.addf %41, %42 : vector<16x128xf32>
    %44 = arith.mulf %38, %30 : vector<16x128xf32>
    %cst_17 = arith.constant 1.000000e+00 : f32
    %45 = vector.broadcast %cst_17 : f32 to vector<16x128xf32>
    %46 = arith.addf %44, %45 : vector<16x128xf32>
    %cst_18 = arith.constant 0.000000e+00 : f32
    %47 = vector.broadcast %cst_18 : f32 to vector<16x128xf32>
    %cst_19 = arith.constant 1.000000e+00 : f32
    %48 = vector.broadcast %cst_19 : f32 to vector<16x128xf32>
    %49 = arith.divf %48, %32 : vector<16x128xf32>
    %50 = arith.addf %47, %49 : vector<16x128xf32>
    %cst_20 = arith.constant 1.000000e+00 : f32
    %51 = vector.broadcast %cst_20 : f32 to vector<16x128xf32>
    %52 = arith.addf %32, %51 : vector<16x128xf32>
    %cst_21 = arith.constant 1.000000e+00 : f32
    %53 = vector.broadcast %cst_21 : f32 to vector<16x128xf32>
    %54 = arith.divf %53, %52 : vector<16x128xf32>
    %55 = arith.addf %50, %54 : vector<16x128xf32>
    %cst_22 = arith.constant 1.000000e+00 : f32
    %56 = vector.broadcast %cst_22 : f32 to vector<16x128xf32>
    %57 = arith.addf %52, %56 : vector<16x128xf32>
    %cst_23 = arith.constant 1.000000e+00 : f32
    %58 = vector.broadcast %cst_23 : f32 to vector<16x128xf32>
    %59 = arith.divf %58, %57 : vector<16x128xf32>
    %60 = arith.addf %55, %59 : vector<16x128xf32>
    %cst_24 = arith.constant 1.000000e+00 : f32
    %61 = vector.broadcast %cst_24 : f32 to vector<16x128xf32>
    %62 = arith.addf %57, %61 : vector<16x128xf32>
    %cst_25 = arith.constant 1.000000e+00 : f32
    %63 = vector.broadcast %cst_25 : f32 to vector<16x128xf32>
    %64 = arith.divf %63, %62 : vector<16x128xf32>
    %65 = arith.addf %60, %64 : vector<16x128xf32>
    %cst_26 = arith.constant 1.000000e+00 : f32
    %66 = vector.broadcast %cst_26 : f32 to vector<16x128xf32>
    %67 = arith.addf %62, %66 : vector<16x128xf32>
    %cst_27 = arith.constant 1.000000e+00 : f32
    %68 = vector.broadcast %cst_27 : f32 to vector<16x128xf32>
    %69 = arith.divf %68, %67 : vector<16x128xf32>
    %70 = arith.addf %65, %69 : vector<16x128xf32>
    %cst_28 = arith.constant 1.000000e+00 : f32
    %71 = vector.broadcast %cst_28 : f32 to vector<16x128xf32>
    %72 = arith.addf %67, %71 : vector<16x128xf32>
    %cst_29 = arith.constant 1.000000e+00 : f32
    %73 = vector.broadcast %cst_29 : f32 to vector<16x128xf32>
    %74 = arith.divf %73, %72 : vector<16x128xf32>
    %75 = arith.addf %70, %74 : vector<16x128xf32>
    %cst_30 = arith.constant 1.000000e+00 : f32
    %76 = vector.broadcast %cst_30 : f32 to vector<16x128xf32>
    %77 = arith.addf %72, %76 : vector<16x128xf32>
    %cst_31 = arith.constant 1.000000e+00 : f32
    %78 = vector.broadcast %cst_31 : f32 to vector<16x128xf32>
    %79 = arith.divf %78, %77 : vector<16x128xf32>
    %80 = arith.addf %75, %79 : vector<16x128xf32>
    %cst_32 = arith.constant 1.000000e+00 : f32
    %81 = vector.broadcast %cst_32 : f32 to vector<16x128xf32>
    %82 = arith.addf %77, %81 : vector<16x128xf32>
    %83 = tpu.reciprocal %82 {approx = true} : vector<16x128xf32> -> vector<16x128xf32>
    %84 = arith.mulf %83, %83 : vector<16x128xf32>
    %85 = math.log %82 : vector<16x128xf32>
    %cst_33 = arith.constant 5.000000e-01 : f32
    %86 = vector.broadcast %cst_33 : f32 to vector<16x128xf32>
    %87 = arith.mulf %86, %83 : vector<16x128xf32>
    %88 = arith.subf %85, %87 : vector<16x128xf32>
    %cst_34 = arith.constant 0.0039682542 : f32
    %89 = vector.broadcast %cst_34 : f32 to vector<16x128xf32>
    %90 = arith.mulf %84, %89 : vector<16x128xf32>
    %cst_35 = arith.constant 0.00833333377 : f32
    %91 = vector.broadcast %cst_35 : f32 to vector<16x128xf32>
    %92 = arith.subf %91, %90 : vector<16x128xf32>
    %93 = arith.mulf %84, %92 : vector<16x128xf32>
    %cst_36 = arith.constant 0.0833333358 : f32
    %94 = vector.broadcast %cst_36 : f32 to vector<16x128xf32>
    %95 = arith.subf %94, %93 : vector<16x128xf32>
    %96 = arith.mulf %84, %95 : vector<16x128xf32>
    %97 = arith.subf %88, %96 : vector<16x128xf32>
    %98 = arith.subf %97, %80 : vector<16x128xf32>
    %cst_37 = arith.constant 1.000000e+00 : f32
    %99 = vector.broadcast %cst_37 : f32 to vector<16x128xf32>
    %100 = arith.addf %32, %99 : vector<16x128xf32>
    %101 = arith.mulf %32, %100 : vector<16x128xf32>
    %cst_38 = arith.constant 1.000000e+00 : f32
    %102 = vector.broadcast %cst_38 : f32 to vector<16x128xf32>
    %103 = arith.addf %100, %102 : vector<16x128xf32>
    %104 = arith.mulf %101, %103 : vector<16x128xf32>
    %cst_39 = arith.constant 1.000000e+00 : f32
    %105 = vector.broadcast %cst_39 : f32 to vector<16x128xf32>
    %106 = arith.addf %103, %105 : vector<16x128xf32>
    %107 = arith.mulf %104, %106 : vector<16x128xf32>
    %cst_40 = arith.constant 1.000000e+00 : f32
    %108 = vector.broadcast %cst_40 : f32 to vector<16x128xf32>
    %109 = arith.addf %106, %108 : vector<16x128xf32>
    %110 = arith.mulf %107, %109 : vector<16x128xf32>
    %cst_41 = arith.constant 1.000000e+00 : f32
    %111 = vector.broadcast %cst_41 : f32 to vector<16x128xf32>
    %112 = arith.addf %109, %111 : vector<16x128xf32>
    %113 = arith.mulf %110, %112 : vector<16x128xf32>
    %cst_42 = arith.constant 1.000000e+00 : f32
    %114 = vector.broadcast %cst_42 : f32 to vector<16x128xf32>
    %115 = arith.addf %112, %114 : vector<16x128xf32>
    %116 = arith.mulf %113, %115 : vector<16x128xf32>
    %cst_43 = arith.constant 1.000000e+00 : f32
    %117 = vector.broadcast %cst_43 : f32 to vector<16x128xf32>
    %118 = arith.addf %115, %117 : vector<16x128xf32>
    %119 = tpu.reciprocal %118 {approx = true} : vector<16x128xf32> -> vector<16x128xf32>
    %120 = arith.mulf %119, %119 : vector<16x128xf32>
    %cst_44 = arith.constant 0.0833333358 : f32
    %121 = vector.broadcast %cst_44 : f32 to vector<16x128xf32>
    %122 = arith.mulf %119, %121 : vector<16x128xf32>
    %123 = arith.mulf %120, %119 : vector<16x128xf32>
    %cst_45 = arith.constant 0.00277777785 : f32
    %124 = vector.broadcast %cst_45 : f32 to vector<16x128xf32>
    %125 = arith.mulf %123, %124 : vector<16x128xf32>
    %126 = arith.subf %122, %125 : vector<16x128xf32>
    %127 = arith.mulf %120, %120 : vector<16x128xf32>
    %128 = arith.mulf %127, %119 : vector<16x128xf32>
    %cst_46 = arith.constant 7.93650805E-4 : f32
    %129 = vector.broadcast %cst_46 : f32 to vector<16x128xf32>
    %130 = arith.mulf %128, %129 : vector<16x128xf32>
    %131 = arith.addf %126, %130 : vector<16x128xf32>
    %cst_47 = arith.constant 5.000000e-01 : f32
    %132 = vector.broadcast %cst_47 : f32 to vector<16x128xf32>
    %133 = arith.subf %118, %132 : vector<16x128xf32>
    %134 = math.log %118 : vector<16x128xf32>
    %135 = arith.mulf %133, %134 : vector<16x128xf32>
    %136 = arith.subf %135, %118 : vector<16x128xf32>
    %cst_48 = arith.constant 0.918938517 : f32
    %137 = vector.broadcast %cst_48 : f32 to vector<16x128xf32>
    %138 = arith.addf %136, %137 : vector<16x128xf32>
    %139 = arith.addf %138, %131 : vector<16x128xf32>
    %140 = math.log %116 : vector<16x128xf32>
    %141 = arith.subf %139, %140 : vector<16x128xf32>
    %cst_49 = arith.constant 0.000000e+00 : f32
    %142 = vector.broadcast %cst_49 : f32 to vector<16x128xf32>
    %cst_50 = arith.constant 1.000000e+00 : f32
    %143 = vector.broadcast %cst_50 : f32 to vector<16x128xf32>
    %144 = arith.divf %143, %40 : vector<16x128xf32>
    %145 = arith.addf %142, %144 : vector<16x128xf32>
    %cst_51 = arith.constant 1.000000e+00 : f32
    %146 = vector.broadcast %cst_51 : f32 to vector<16x128xf32>
    %147 = arith.addf %40, %146 : vector<16x128xf32>
    %cst_52 = arith.constant 1.000000e+00 : f32
    %148 = vector.broadcast %cst_52 : f32 to vector<16x128xf32>
    %149 = arith.divf %148, %147 : vector<16x128xf32>
    %150 = arith.addf %145, %149 : vector<16x128xf32>
    %cst_53 = arith.constant 1.000000e+00 : f32
    %151 = vector.broadcast %cst_53 : f32 to vector<16x128xf32>
    %152 = arith.addf %147, %151 : vector<16x128xf32>
    %cst_54 = arith.constant 1.000000e+00 : f32
    %153 = vector.broadcast %cst_54 : f32 to vector<16x128xf32>
    %154 = arith.divf %153, %152 : vector<16x128xf32>
    %155 = arith.addf %150, %154 : vector<16x128xf32>
    %cst_55 = arith.constant 1.000000e+00 : f32
    %156 = vector.broadcast %cst_55 : f32 to vector<16x128xf32>
    %157 = arith.addf %152, %156 : vector<16x128xf32>
    %cst_56 = arith.constant 1.000000e+00 : f32
    %158 = vector.broadcast %cst_56 : f32 to vector<16x128xf32>
    %159 = arith.divf %158, %157 : vector<16x128xf32>
    %160 = arith.addf %155, %159 : vector<16x128xf32>
    %cst_57 = arith.constant 1.000000e+00 : f32
    %161 = vector.broadcast %cst_57 : f32 to vector<16x128xf32>
    %162 = arith.addf %157, %161 : vector<16x128xf32>
    %cst_58 = arith.constant 1.000000e+00 : f32
    %163 = vector.broadcast %cst_58 : f32 to vector<16x128xf32>
    %164 = arith.divf %163, %162 : vector<16x128xf32>
    %165 = arith.addf %160, %164 : vector<16x128xf32>
    %cst_59 = arith.constant 1.000000e+00 : f32
    %166 = vector.broadcast %cst_59 : f32 to vector<16x128xf32>
    %167 = arith.addf %162, %166 : vector<16x128xf32>
    %cst_60 = arith.constant 1.000000e+00 : f32
    %168 = vector.broadcast %cst_60 : f32 to vector<16x128xf32>
    %169 = arith.divf %168, %167 : vector<16x128xf32>
    %170 = arith.addf %165, %169 : vector<16x128xf32>
    %cst_61 = arith.constant 1.000000e+00 : f32
    %171 = vector.broadcast %cst_61 : f32 to vector<16x128xf32>
    %172 = arith.addf %167, %171 : vector<16x128xf32>
    %cst_62 = arith.constant 1.000000e+00 : f32
    %173 = vector.broadcast %cst_62 : f32 to vector<16x128xf32>
    %174 = arith.divf %173, %172 : vector<16x128xf32>
    %175 = arith.addf %170, %174 : vector<16x128xf32>
    %cst_63 = arith.constant 1.000000e+00 : f32
    %176 = vector.broadcast %cst_63 : f32 to vector<16x128xf32>
    %177 = arith.addf %172, %176 : vector<16x128xf32>
    %178 = tpu.reciprocal %177 {approx = true} : vector<16x128xf32> -> vector<16x128xf32>
    %179 = arith.mulf %178, %178 : vector<16x128xf32>
    %180 = math.log %177 : vector<16x128xf32>
    %cst_64 = arith.constant 5.000000e-01 : f32
    %181 = vector.broadcast %cst_64 : f32 to vector<16x128xf32>
    %182 = arith.mulf %181, %178 : vector<16x128xf32>
    %183 = arith.subf %180, %182 : vector<16x128xf32>
    %cst_65 = arith.constant 0.0039682542 : f32
    %184 = vector.broadcast %cst_65 : f32 to vector<16x128xf32>
    %185 = arith.mulf %179, %184 : vector<16x128xf32>
    %cst_66 = arith.constant 0.00833333377 : f32
    %186 = vector.broadcast %cst_66 : f32 to vector<16x128xf32>
    %187 = arith.subf %186, %185 : vector<16x128xf32>
    %188 = arith.mulf %179, %187 : vector<16x128xf32>
    %cst_67 = arith.constant 0.0833333358 : f32
    %189 = vector.broadcast %cst_67 : f32 to vector<16x128xf32>
    %190 = arith.subf %189, %188 : vector<16x128xf32>
    %191 = arith.mulf %179, %190 : vector<16x128xf32>
    %192 = arith.subf %183, %191 : vector<16x128xf32>
    %193 = arith.subf %192, %175 : vector<16x128xf32>
    %cst_68 = arith.constant 1.000000e+00 : f32
    %194 = vector.broadcast %cst_68 : f32 to vector<16x128xf32>
    %195 = arith.addf %40, %194 : vector<16x128xf32>
    %196 = arith.mulf %40, %195 : vector<16x128xf32>
    %cst_69 = arith.constant 1.000000e+00 : f32
    %197 = vector.broadcast %cst_69 : f32 to vector<16x128xf32>
    %198 = arith.addf %195, %197 : vector<16x128xf32>
    %199 = arith.mulf %196, %198 : vector<16x128xf32>
    %cst_70 = arith.constant 1.000000e+00 : f32
    %200 = vector.broadcast %cst_70 : f32 to vector<16x128xf32>
    %201 = arith.addf %198, %200 : vector<16x128xf32>
    %202 = arith.mulf %199, %201 : vector<16x128xf32>
    %cst_71 = arith.constant 1.000000e+00 : f32
    %203 = vector.broadcast %cst_71 : f32 to vector<16x128xf32>
    %204 = arith.addf %201, %203 : vector<16x128xf32>
    %205 = arith.mulf %202, %204 : vector<16x128xf32>
    %cst_72 = arith.constant 1.000000e+00 : f32
    %206 = vector.broadcast %cst_72 : f32 to vector<16x128xf32>
    %207 = arith.addf %204, %206 : vector<16x128xf32>
    %208 = arith.mulf %205, %207 : vector<16x128xf32>
    %cst_73 = arith.constant 1.000000e+00 : f32
    %209 = vector.broadcast %cst_73 : f32 to vector<16x128xf32>
    %210 = arith.addf %207, %209 : vector<16x128xf32>
    %211 = arith.mulf %208, %210 : vector<16x128xf32>
    %cst_74 = arith.constant 1.000000e+00 : f32
    %212 = vector.broadcast %cst_74 : f32 to vector<16x128xf32>
    %213 = arith.addf %210, %212 : vector<16x128xf32>
    %214 = tpu.reciprocal %213 {approx = true} : vector<16x128xf32> -> vector<16x128xf32>
    %215 = arith.mulf %214, %214 : vector<16x128xf32>
    %cst_75 = arith.constant 0.0833333358 : f32
    %216 = vector.broadcast %cst_75 : f32 to vector<16x128xf32>
    %217 = arith.mulf %214, %216 : vector<16x128xf32>
    %218 = arith.mulf %215, %214 : vector<16x128xf32>
    %cst_76 = arith.constant 0.00277777785 : f32
    %219 = vector.broadcast %cst_76 : f32 to vector<16x128xf32>
    %220 = arith.mulf %218, %219 : vector<16x128xf32>
    %221 = arith.subf %217, %220 : vector<16x128xf32>
    %222 = arith.mulf %215, %215 : vector<16x128xf32>
    %223 = arith.mulf %222, %214 : vector<16x128xf32>
    %cst_77 = arith.constant 7.93650805E-4 : f32
    %224 = vector.broadcast %cst_77 : f32 to vector<16x128xf32>
    %225 = arith.mulf %223, %224 : vector<16x128xf32>
    %226 = arith.addf %221, %225 : vector<16x128xf32>
    %cst_78 = arith.constant 5.000000e-01 : f32
    %227 = vector.broadcast %cst_78 : f32 to vector<16x128xf32>
    %228 = arith.subf %213, %227 : vector<16x128xf32>
    %229 = math.log %213 : vector<16x128xf32>
    %230 = arith.mulf %228, %229 : vector<16x128xf32>
    %231 = arith.subf %230, %213 : vector<16x128xf32>
    %cst_79 = arith.constant 0.918938517 : f32
    %232 = vector.broadcast %cst_79 : f32 to vector<16x128xf32>
    %233 = arith.addf %231, %232 : vector<16x128xf32>
    %234 = arith.addf %233, %226 : vector<16x128xf32>
    %235 = math.log %211 : vector<16x128xf32>
    %236 = arith.subf %234, %235 : vector<16x128xf32>
    %237 = arith.mulf %32, %21 : vector<16x128xf32>
    %cst_80 = arith.constant dense<0.000000e+00> : vector<16xf32>
    %238 = vector.multi_reduction <add>, %237, %cst_80 [1] : vector<16x128xf32> to vector<16xf32>
    %239 = vector.shape_cast %238 : vector<16xf32> to vector<16x1xf32>
    %240 = arith.mulf %43, %21 : vector<16x128xf32>
    %cst_81 = arith.constant dense<0.000000e+00> : vector<16xf32>
    %241 = vector.multi_reduction <add>, %240, %cst_81 [1] : vector<16x128xf32> to vector<16xf32>
    %242 = vector.shape_cast %241 : vector<16xf32> to vector<16x1xf32>
    %243 = arith.mulf %40, %21 : vector<16x128xf32>
    %cst_82 = arith.constant dense<0.000000e+00> : vector<16xf32>
    %244 = vector.multi_reduction <add>, %243, %cst_82 [1] : vector<16x128xf32> to vector<16xf32>
    %245 = vector.shape_cast %244 : vector<16xf32> to vector<16x1xf32>
    %246 = arith.mulf %46, %21 : vector<16x128xf32>
    %cst_83 = arith.constant dense<0.000000e+00> : vector<16xf32>
    %247 = vector.multi_reduction <add>, %246, %cst_83 [1] : vector<16x128xf32> to vector<16xf32>
    %248 = vector.shape_cast %247 : vector<16xf32> to vector<16x1xf32>
    %cst_84 = arith.constant 1.000000e+00 : f32
    %249 = vector.broadcast %cst_84 : f32 to vector<16x128xf32>
    %c0_i32 = arith.constant 0 : i32
    %250 = vector.broadcast %c0_i32 : i32 to vector<16x128xi32>
    %251 = arith.cmpi eq, %17, %250 : vector<16x128xi32>
    %252 = vector.shape_cast %239 : vector<16x1xf32> to vector<16x1xf32>
    %253 = vector.broadcast %252 : vector<16x1xf32> to vector<16x128xf32>
    %254 = arith.select %251, %253, %249 : vector<16x128xi1>, vector<16x128xf32>
    %c1_i32 = arith.constant 1 : i32
    %255 = vector.broadcast %c1_i32 : i32 to vector<16x128xi32>
    %256 = arith.cmpi eq, %17, %255 : vector<16x128xi32>
    %257 = vector.shape_cast %242 : vector<16x1xf32> to vector<16x1xf32>
    %258 = vector.broadcast %257 : vector<16x1xf32> to vector<16x128xf32>
    %259 = arith.select %256, %258, %254 : vector<16x128xi1>, vector<16x128xf32>
    %c2_i32_85 = arith.constant 2 : i32
    %260 = vector.broadcast %c2_i32_85 : i32 to vector<16x128xi32>
    %261 = arith.cmpi eq, %17, %260 : vector<16x128xi32>
    %262 = vector.shape_cast %245 : vector<16x1xf32> to vector<16x1xf32>
    %263 = vector.broadcast %262 : vector<16x1xf32> to vector<16x128xf32>
    %264 = arith.select %261, %263, %259 : vector<16x128xi1>, vector<16x128xf32>
    %c3_i32 = arith.constant 3 : i32
    %265 = vector.broadcast %c3_i32 : i32 to vector<16x128xi32>
    %266 = arith.cmpi eq, %17, %265 : vector<16x128xi32>
    %267 = vector.shape_cast %248 : vector<16x1xf32> to vector<16x1xf32>
    %268 = vector.broadcast %267 : vector<16x1xf32> to vector<16x128xf32>
    %269 = arith.select %266, %268, %264 : vector<16x128xi1>, vector<16x128xf32>
    %cst_86 = arith.constant 0.000000e+00 : f32
    %270 = vector.broadcast %cst_86 : f32 to vector<16x128xf32>
    %cst_87 = arith.constant 1.000000e+00 : f32
    %271 = vector.broadcast %cst_87 : f32 to vector<16x128xf32>
    %272 = arith.divf %271, %269 : vector<16x128xf32>
    %273 = arith.addf %270, %272 : vector<16x128xf32>
    %cst_88 = arith.constant 1.000000e+00 : f32
    %274 = vector.broadcast %cst_88 : f32 to vector<16x128xf32>
    %275 = arith.addf %269, %274 : vector<16x128xf32>
    %cst_89 = arith.constant 1.000000e+00 : f32
    %276 = vector.broadcast %cst_89 : f32 to vector<16x128xf32>
    %277 = arith.divf %276, %275 : vector<16x128xf32>
    %278 = arith.addf %273, %277 : vector<16x128xf32>
    %cst_90 = arith.constant 1.000000e+00 : f32
    %279 = vector.broadcast %cst_90 : f32 to vector<16x128xf32>
    %280 = arith.addf %275, %279 : vector<16x128xf32>
    %cst_91 = arith.constant 1.000000e+00 : f32
    %281 = vector.broadcast %cst_91 : f32 to vector<16x128xf32>
    %282 = arith.divf %281, %280 : vector<16x128xf32>
    %283 = arith.addf %278, %282 : vector<16x128xf32>
    %cst_92 = arith.constant 1.000000e+00 : f32
    %284 = vector.broadcast %cst_92 : f32 to vector<16x128xf32>
    %285 = arith.addf %280, %284 : vector<16x128xf32>
    %cst_93 = arith.constant 1.000000e+00 : f32
    %286 = vector.broadcast %cst_93 : f32 to vector<16x128xf32>
    %287 = arith.divf %286, %285 : vector<16x128xf32>
    %288 = arith.addf %283, %287 : vector<16x128xf32>
    %cst_94 = arith.constant 1.000000e+00 : f32
    %289 = vector.broadcast %cst_94 : f32 to vector<16x128xf32>
    %290 = arith.addf %285, %289 : vector<16x128xf32>
    %cst_95 = arith.constant 1.000000e+00 : f32
    %291 = vector.broadcast %cst_95 : f32 to vector<16x128xf32>
    %292 = arith.divf %291, %290 : vector<16x128xf32>
    %293 = arith.addf %288, %292 : vector<16x128xf32>
    %cst_96 = arith.constant 1.000000e+00 : f32
    %294 = vector.broadcast %cst_96 : f32 to vector<16x128xf32>
    %295 = arith.addf %290, %294 : vector<16x128xf32>
    %cst_97 = arith.constant 1.000000e+00 : f32
    %296 = vector.broadcast %cst_97 : f32 to vector<16x128xf32>
    %297 = arith.divf %296, %295 : vector<16x128xf32>
    %298 = arith.addf %293, %297 : vector<16x128xf32>
    %cst_98 = arith.constant 1.000000e+00 : f32
    %299 = vector.broadcast %cst_98 : f32 to vector<16x128xf32>
    %300 = arith.addf %295, %299 : vector<16x128xf32>
    %cst_99 = arith.constant 1.000000e+00 : f32
    %301 = vector.broadcast %cst_99 : f32 to vector<16x128xf32>
    %302 = arith.divf %301, %300 : vector<16x128xf32>
    %303 = arith.addf %298, %302 : vector<16x128xf32>
    %cst_100 = arith.constant 1.000000e+00 : f32
    %304 = vector.broadcast %cst_100 : f32 to vector<16x128xf32>
    %305 = arith.addf %300, %304 : vector<16x128xf32>
    %306 = tpu.reciprocal %305 {approx = true} : vector<16x128xf32> -> vector<16x128xf32>
    %307 = arith.mulf %306, %306 : vector<16x128xf32>
    %308 = math.log %305 : vector<16x128xf32>
    %cst_101 = arith.constant 5.000000e-01 : f32
    %309 = vector.broadcast %cst_101 : f32 to vector<16x128xf32>
    %310 = arith.mulf %309, %306 : vector<16x128xf32>
    %311 = arith.subf %308, %310 : vector<16x128xf32>
    %cst_102 = arith.constant 0.0039682542 : f32
    %312 = vector.broadcast %cst_102 : f32 to vector<16x128xf32>
    %313 = arith.mulf %307, %312 : vector<16x128xf32>
    %cst_103 = arith.constant 0.00833333377 : f32
    %314 = vector.broadcast %cst_103 : f32 to vector<16x128xf32>
    %315 = arith.subf %314, %313 : vector<16x128xf32>
    %316 = arith.mulf %307, %315 : vector<16x128xf32>
    %cst_104 = arith.constant 0.0833333358 : f32
    %317 = vector.broadcast %cst_104 : f32 to vector<16x128xf32>
    %318 = arith.subf %317, %316 : vector<16x128xf32>
    %319 = arith.mulf %307, %318 : vector<16x128xf32>
    %320 = arith.subf %311, %319 : vector<16x128xf32>
    %321 = arith.subf %320, %303 : vector<16x128xf32>
    %cst_105 = arith.constant 1.000000e+00 : f32
    %322 = vector.broadcast %cst_105 : f32 to vector<16x128xf32>
    %c0_i32_106 = arith.constant 0 : i32
    %323 = vector.broadcast %c0_i32_106 : i32 to vector<16x128xi32>
    %324 = arith.cmpi eq, %17, %323 : vector<16x128xi32>
    %325 = vector.shape_cast %242 : vector<16x1xf32> to vector<16x1xf32>
    %326 = vector.broadcast %325 : vector<16x1xf32> to vector<16x128xf32>
    %327 = arith.select %324, %326, %322 : vector<16x128xi1>, vector<16x128xf32>
    %c1_i32_107 = arith.constant 1 : i32
    %328 = vector.broadcast %c1_i32_107 : i32 to vector<16x128xi32>
    %329 = arith.cmpi eq, %17, %328 : vector<16x128xi32>
    %330 = vector.shape_cast %248 : vector<16x1xf32> to vector<16x1xf32>
    %331 = vector.broadcast %330 : vector<16x1xf32> to vector<16x128xf32>
    %332 = arith.select %329, %331, %327 : vector<16x128xi1>, vector<16x128xf32>
    %cst_108 = arith.constant 1.000000e+00 : f32
    %333 = vector.broadcast %cst_108 : f32 to vector<16x128xf32>
    %334 = arith.addf %332, %333 : vector<16x128xf32>
    %335 = arith.mulf %332, %334 : vector<16x128xf32>
    %cst_109 = arith.constant 1.000000e+00 : f32
    %336 = vector.broadcast %cst_109 : f32 to vector<16x128xf32>
    %337 = arith.addf %334, %336 : vector<16x128xf32>
    %338 = arith.mulf %335, %337 : vector<16x128xf32>
    %cst_110 = arith.constant 1.000000e+00 : f32
    %339 = vector.broadcast %cst_110 : f32 to vector<16x128xf32>
    %340 = arith.addf %337, %339 : vector<16x128xf32>
    %341 = arith.mulf %338, %340 : vector<16x128xf32>
    %cst_111 = arith.constant 1.000000e+00 : f32
    %342 = vector.broadcast %cst_111 : f32 to vector<16x128xf32>
    %343 = arith.addf %340, %342 : vector<16x128xf32>
    %344 = arith.mulf %341, %343 : vector<16x128xf32>
    %cst_112 = arith.constant 1.000000e+00 : f32
    %345 = vector.broadcast %cst_112 : f32 to vector<16x128xf32>
    %346 = arith.addf %343, %345 : vector<16x128xf32>
    %347 = arith.mulf %344, %346 : vector<16x128xf32>
    %cst_113 = arith.constant 1.000000e+00 : f32
    %348 = vector.broadcast %cst_113 : f32 to vector<16x128xf32>
    %349 = arith.addf %346, %348 : vector<16x128xf32>
    %350 = arith.mulf %347, %349 : vector<16x128xf32>
    %cst_114 = arith.constant 1.000000e+00 : f32
    %351 = vector.broadcast %cst_114 : f32 to vector<16x128xf32>
    %352 = arith.addf %349, %351 : vector<16x128xf32>
    %353 = tpu.reciprocal %352 {approx = true} : vector<16x128xf32> -> vector<16x128xf32>
    %354 = arith.mulf %353, %353 : vector<16x128xf32>
    %cst_115 = arith.constant 0.0833333358 : f32
    %355 = vector.broadcast %cst_115 : f32 to vector<16x128xf32>
    %356 = arith.mulf %353, %355 : vector<16x128xf32>
    %357 = arith.mulf %354, %353 : vector<16x128xf32>
    %cst_116 = arith.constant 0.00277777785 : f32
    %358 = vector.broadcast %cst_116 : f32 to vector<16x128xf32>
    %359 = arith.mulf %357, %358 : vector<16x128xf32>
    %360 = arith.subf %356, %359 : vector<16x128xf32>
    %361 = arith.mulf %354, %354 : vector<16x128xf32>
    %362 = arith.mulf %361, %353 : vector<16x128xf32>
    %cst_117 = arith.constant 7.93650805E-4 : f32
    %363 = vector.broadcast %cst_117 : f32 to vector<16x128xf32>
    %364 = arith.mulf %362, %363 : vector<16x128xf32>
    %365 = arith.addf %360, %364 : vector<16x128xf32>
    %cst_118 = arith.constant 5.000000e-01 : f32
    %366 = vector.broadcast %cst_118 : f32 to vector<16x128xf32>
    %367 = arith.subf %352, %366 : vector<16x128xf32>
    %368 = math.log %352 : vector<16x128xf32>
    %369 = arith.mulf %367, %368 : vector<16x128xf32>
    %370 = arith.subf %369, %352 : vector<16x128xf32>
    %cst_119 = arith.constant 0.918938517 : f32
    %371 = vector.broadcast %cst_119 : f32 to vector<16x128xf32>
    %372 = arith.addf %370, %371 : vector<16x128xf32>
    %373 = arith.addf %372, %365 : vector<16x128xf32>
    %374 = math.log %350 : vector<16x128xf32>
    %375 = arith.subf %373, %374 : vector<16x128xf32>
    %c0_i32_120 = arith.constant 0 : i32
    %376 = vector.broadcast %c0_i32_120 : i32 to vector<16x128xi32>
    %377 = arith.cmpi eq, %17, %376 : vector<16x128xi32>
    %cst_121 = arith.constant 0.000000e+00 : f32
    %378 = vector.broadcast %cst_121 : f32 to vector<16x128xf32>
    %379 = arith.select %377, %321, %378 : vector<16x128xi1>, vector<16x128xf32>
    %cst_122 = arith.constant dense<0.000000e+00> : vector<16xf32>
    %380 = vector.multi_reduction <add>, %379, %cst_122 [1] : vector<16x128xf32> to vector<16xf32>
    %381 = vector.shape_cast %380 : vector<16xf32> to vector<16x1xf32>
    %c1_i32_123 = arith.constant 1 : i32
    %382 = vector.broadcast %c1_i32_123 : i32 to vector<16x128xi32>
    %383 = arith.cmpi eq, %17, %382 : vector<16x128xi32>
    %cst_124 = arith.constant 0.000000e+00 : f32
    %384 = vector.broadcast %cst_124 : f32 to vector<16x128xf32>
    %385 = arith.select %383, %321, %384 : vector<16x128xi1>, vector<16x128xf32>
    %cst_125 = arith.constant dense<0.000000e+00> : vector<16xf32>
    %386 = vector.multi_reduction <add>, %385, %cst_125 [1] : vector<16x128xf32> to vector<16xf32>
    %387 = vector.shape_cast %386 : vector<16xf32> to vector<16x1xf32>
    %c2_i32_126 = arith.constant 2 : i32
    %388 = vector.broadcast %c2_i32_126 : i32 to vector<16x128xi32>
    %389 = arith.cmpi eq, %17, %388 : vector<16x128xi32>
    %cst_127 = arith.constant 0.000000e+00 : f32
    %390 = vector.broadcast %cst_127 : f32 to vector<16x128xf32>
    %391 = arith.select %389, %321, %390 : vector<16x128xi1>, vector<16x128xf32>
    %cst_128 = arith.constant dense<0.000000e+00> : vector<16xf32>
    %392 = vector.multi_reduction <add>, %391, %cst_128 [1] : vector<16x128xf32> to vector<16xf32>
    %393 = vector.shape_cast %392 : vector<16xf32> to vector<16x1xf32>
    %c3_i32_129 = arith.constant 3 : i32
    %394 = vector.broadcast %c3_i32_129 : i32 to vector<16x128xi32>
    %395 = arith.cmpi eq, %17, %394 : vector<16x128xi32>
    %cst_130 = arith.constant 0.000000e+00 : f32
    %396 = vector.broadcast %cst_130 : f32 to vector<16x128xf32>
    %397 = arith.select %395, %321, %396 : vector<16x128xi1>, vector<16x128xf32>
    %cst_131 = arith.constant dense<0.000000e+00> : vector<16xf32>
    %398 = vector.multi_reduction <add>, %397, %cst_131 [1] : vector<16x128xf32> to vector<16xf32>
    %399 = vector.shape_cast %398 : vector<16xf32> to vector<16x1xf32>
    %c0_i32_132 = arith.constant 0 : i32
    %400 = vector.broadcast %c0_i32_132 : i32 to vector<16x128xi32>
    %401 = arith.cmpi eq, %17, %400 : vector<16x128xi32>
    %cst_133 = arith.constant 0.000000e+00 : f32
    %402 = vector.broadcast %cst_133 : f32 to vector<16x128xf32>
    %403 = arith.select %401, %375, %402 : vector<16x128xi1>, vector<16x128xf32>
    %cst_134 = arith.constant dense<0.000000e+00> : vector<16xf32>
    %404 = vector.multi_reduction <add>, %403, %cst_134 [1] : vector<16x128xf32> to vector<16xf32>
    %405 = vector.shape_cast %404 : vector<16xf32> to vector<16x1xf32>
    %c1_i32_135 = arith.constant 1 : i32
    %406 = vector.broadcast %c1_i32_135 : i32 to vector<16x128xi32>
    %407 = arith.cmpi eq, %17, %406 : vector<16x128xi32>
    %cst_136 = arith.constant 0.000000e+00 : f32
    %408 = vector.broadcast %cst_136 : f32 to vector<16x128xf32>
    %409 = arith.select %407, %375, %408 : vector<16x128xi1>, vector<16x128xf32>
    %cst_137 = arith.constant dense<0.000000e+00> : vector<16xf32>
    %410 = vector.multi_reduction <add>, %409, %cst_137 [1] : vector<16x128xf32> to vector<16xf32>
    %411 = vector.shape_cast %410 : vector<16xf32> to vector<16x1xf32>
    %412 = vector.broadcast %381 : vector<16x1xf32> to vector<16x128xf32>
    %413 = arith.subf %412, %98 : vector<16x128xf32>
    %414 = arith.mulf %28, %413 : vector<16x128xf32>
    %415 = arith.mulf %414, %21 : vector<16x128xf32>
    %cst_138 = arith.constant dense<0.000000e+00> : vector<16xf32>
    %416 = vector.multi_reduction <add>, %415, %cst_138 [1] : vector<16x128xf32> to vector<16xf32>
    %417 = vector.shape_cast %416 : vector<16xf32> to vector<16x1xf32>
    %418 = arith.mulf %30, %27 : vector<16x128xf32>
    %419 = vector.broadcast %387 : vector<16x1xf32> to vector<16x128xf32>
    %420 = arith.subf %98, %419 : vector<16x128xf32>
    %421 = arith.mulf %418, %420 : vector<16x128xf32>
    %422 = arith.mulf %421, %21 : vector<16x128xf32>
    %cst_139 = arith.constant dense<0.000000e+00> : vector<16xf32>
    %423 = vector.multi_reduction <add>, %422, %cst_139 [1] : vector<16x128xf32> to vector<16xf32>
    %424 = vector.shape_cast %423 : vector<16xf32> to vector<16x1xf32>
    %425 = arith.mulf %30, %141 : vector<16x128xf32>
    %426 = arith.mulf %425, %21 : vector<16x128xf32>
    %cst_140 = arith.constant dense<0.000000e+00> : vector<16xf32>
    %427 = vector.multi_reduction <add>, %426, %cst_140 [1] : vector<16x128xf32> to vector<16xf32>
    %428 = vector.shape_cast %427 : vector<16xf32> to vector<16x1xf32>
    %429 = arith.addf %424, %405 : vector<16x1xf32>
    %430 = arith.subf %429, %428 : vector<16x1xf32>
    %cst_141 = arith.constant 1.79175949 : f32
    %431 = vector.broadcast %cst_141 : f32 to vector<16x1xf32>
    %432 = arith.subf %430, %431 : vector<16x1xf32>
    %433 = vector.broadcast %0 : f32 to vector<16x1xf32>
    %434 = arith.mulf %433, %432 : vector<16x1xf32>
    %435 = arith.addf %417, %434 : vector<16x1xf32>
    %436 = vector.broadcast %393 : vector<16x1xf32> to vector<16x128xf32>
    %437 = arith.subf %436, %193 : vector<16x128xf32>
    %438 = arith.mulf %28, %437 : vector<16x128xf32>
    %439 = arith.mulf %438, %21 : vector<16x128xf32>
    %cst_142 = arith.constant dense<0.000000e+00> : vector<16xf32>
    %440 = vector.multi_reduction <add>, %439, %cst_142 [1] : vector<16x128xf32> to vector<16xf32>
    %441 = vector.shape_cast %440 : vector<16xf32> to vector<16x1xf32>
    %442 = arith.mulf %30, %38 : vector<16x128xf32>
    %443 = vector.broadcast %399 : vector<16x1xf32> to vector<16x128xf32>
    %444 = arith.subf %193, %443 : vector<16x128xf32>
    %445 = arith.mulf %442, %444 : vector<16x128xf32>
    %446 = arith.mulf %445, %21 : vector<16x128xf32>
    %cst_143 = arith.constant dense<0.000000e+00> : vector<16xf32>
    %447 = vector.multi_reduction <add>, %446, %cst_143 [1] : vector<16x128xf32> to vector<16xf32>
    %448 = vector.shape_cast %447 : vector<16xf32> to vector<16x1xf32>
    %449 = arith.mulf %30, %236 : vector<16x128xf32>
    %450 = arith.mulf %449, %21 : vector<16x128xf32>
    %cst_144 = arith.constant dense<0.000000e+00> : vector<16xf32>
    %451 = vector.multi_reduction <add>, %450, %cst_144 [1] : vector<16x128xf32> to vector<16xf32>
    %452 = vector.shape_cast %451 : vector<16xf32> to vector<16x1xf32>
    %453 = arith.addf %448, %411 : vector<16x1xf32>
    %454 = arith.subf %453, %452 : vector<16x1xf32>
    %cst_145 = arith.constant 1.79175949 : f32
    %455 = vector.broadcast %cst_145 : f32 to vector<16x1xf32>
    %456 = arith.subf %454, %455 : vector<16x1xf32>
    %457 = vector.broadcast %0 : f32 to vector<16x1xf32>
    %458 = arith.mulf %457, %456 : vector<16x1xf32>
    %459 = arith.addf %441, %458 : vector<16x1xf32>
    %cst_146 = arith.constant 2.000000e+00 : f32
    %460 = vector.broadcast %cst_146 : f32 to vector<16x1xf32>
    %461 = arith.mulf %460, %435 : vector<16x1xf32>
    %462 = arith.addf %461, %459 : vector<16x1xf32>
    %463 = arith.mulf %462, %26 : vector<16x1xf32>
    %cst_147 = arith.constant dense<0.000000e+00> : vector<1xf32>
    %464 = vector.multi_reduction <add>, %463, %cst_147 [0] : vector<16x1xf32> to vector<1xf32>
    %465 = vector.shape_cast %464 : vector<1xf32> to vector<1x1xf32>
    %cst_148 = arith.constant 5.000000e-01 : f32
    %466 = vector.broadcast %cst_148 : f32 to vector<1x1xf32>
    %467 = arith.mulf %465, %466 : vector<1x1xf32>
    %c0_149 = arith.constant 0 : index
    %c0_150 = arith.constant 0 : index
    %468 = vector.load %arg5[%c0_149, %c0_150] : memref<1x1xf32, #tpu.memory_space<vmem>>, vector<1x1xf32>
    tpu.vector_store %arg5[%c0_149, %c0_150], %467 {strides = array<i32>} : memref<1x1xf32, #tpu.memory_space<vmem>>, vector<1x1xf32>,
    %cst_151 = arith.constant 5.000000e-01 : f32
    %469 = vector.broadcast %cst_151 : f32 to vector<16x128xf32>
    %470 = arith.mulf %469, %38 : vector<16x128xf32>
    %471 = math.tanh %470 : vector<16x128xf32>
    %cst_152 = arith.constant 1.000000e+00 : f32
    %472 = vector.broadcast %cst_152 : f32 to vector<16x128xf32>
    %473 = arith.addf %471, %472 : vector<16x128xf32>
    %cst_153 = arith.constant 5.000000e-01 : f32
    %474 = vector.broadcast %cst_153 : f32 to vector<16x128xf32>
    %475 = arith.mulf %474, %473 : vector<16x128xf32>
    %c0_154 = arith.constant 0 : index
    %c0_155 = arith.constant 0 : index
    %476 = vector.load %arg6[%c0_154, %c0_155] : memref<16x128xf32, #tpu.memory_space<vmem>>, vector<16x128xf32>
    tpu.vector_store %arg6[%c0_154, %c0_155], %475 {strides = array<i32>} : memref<16x128xf32, #tpu.memory_space<vmem>>, vector<16x128xf32>,
    return
  }
}

</mosaic_0001>

<llo_original>
// kernel: _forward_impl.2
$region0: #{_forward_impl.2}
  #allocation0 [shape = 'u32[]', space=smem, size = 0x4, offset = 0x4, fixed_abs, tag = 'smem constant byte address 0x4 - core index']
  #allocation1 [shape = 'u32[144,128]{1,0:T(1,128)}', space=vmem, size = 0x12000, scoped, tag = 'internal scratch']
  #allocation2 [shape = 'f32[16,128]{1,0:T(8,128)}', space=vmem, size = 0x2000, scoped, tag = 'scratch operand']
  %s0 = inlined_call_operand.vmem [shape: bf16[16,1024], index: 0, kind: input, shape index: {}]
  %s1 = inlined_call_operand.hbm [shape: bf16[1024,128], index: 1, kind: input, shape index: {}]
  %s2 = inlined_call_operand.vmem [shape: f32[1,128], index: 2, kind: input, shape index: {}]
  %s3 = inlined_call_operand.vmem [shape: bf16[16,128], index: 3, kind: output, shape index: {}]
  %s4 = sld [smem:[#allocation0]]
  $region34: #{_forward_impl.2} parent=0
    _
  %s6 = ssub.s32 1, %s4
  %s7 = scalar_select 0, %s6, %s4
  $region1: #{_forward_impl.2} parent=0
    #allocation3 [shape = 'u8[262144]{0}', space=vmem, size = 0x40000, scoped, tag = 'input window, operand 1, single buffered']
    #allocation4 [shape = 's32[1]{0}', space=sflag, size = 0x4, scoped, tag = 'scoped memory for _forward_impl.2']
    %8 = vsyncpa [#allocation4], 0
    // Predicated region
    $region2: #{_forward_impl.2} parent=1 // pred_check
      _
    $region3: #{_forward_impl.2} parent=1 // pred_check_branch
      %10 = sbr.rel (0) target = $region5
    $region4: #{_forward_impl.2} parent=1 // pred_region
      _
    $region5: #{_forward_impl.2} parent=1 // pred_fallthru
      _
    // Predicated region
    $region6: #{_forward_impl.2} parent=1 // pred_check
      _
    $region7: #{_forward_impl.2} parent=1 // pred_check_branch
      %12 = sbr.rel (0) target = $region9
    $region8: #{_forward_impl.2} parent=1 // pred_region
      %s14 = ssub.s32 8192, 8192
      %15 = vsyncadd [#allocation4], %s14
      %s16 = sshll.u32 [#allocation3], 4
      %s17 = int_to_ptr.vmem [resolvable:$true] %s16
      %22 = dma.hbm_to_vmem [thread:$0]  %s1, 8192, %s17, [#allocation4], 64, 64, 4
    $region9: #{_forward_impl.2} parent=1 // pred_fallthru
      _
    // Predicated region
    $region10: #{_forward_impl.2} parent=1 // pred_check
      _
    $region11: #{_forward_impl.2} parent=1 // pred_check_branch
      %24 = sbr.rel (0) target = $region13
    $region12: #{_forward_impl.2} parent=1 // pred_region
      _
    $region13: #{_forward_impl.2} parent=1 // pred_fallthru
      _
    // Predicated region
    $region14: #{_forward_impl.2} parent=1 // pred_check
      _
    $region15: #{_forward_impl.2} parent=1 // pred_check_branch
      %26 = sbr.rel (0) target = $region17
    $region16: #{_forward_impl.2} parent=1 // pred_region
      %27 = dma.done [#allocation4], 8192
    $region17: #{_forward_impl.2} parent=1 // pred_fallthru
      _
    %p29 = scmp.eq.s32.totalorder 0, 0
    // Predicated region
    $region18: #{_forward_impl.2} parent=1 // pred_check
      %p30 = pneg %p29
    $region19: #{_forward_impl.2} parent=1 // pred_check_branch
      %32 = sbr.rel (%p30) target = $region21
    $region20: #{_forward_impl.2} parent=1 // pred_region
      %33 = vst [vmem:[#allocation2] sm:$0xff] 0.0
      %34 = vst [vmem:[#allocation2 + $0x8] sm:$0xff] 0.0
    $region21: #{_forward_impl.2} parent=1 // pred_fallthru
      _
    %v35 = vld [vmem:[#allocation2] sm:$0xff]
    %v36 = vld [vmem:[#allocation2 + $0x8] sm:$0xff]
    %v37 = vld [vmem:[%s0] sm:$0xff]
    %v38 = vld [vmem:[%s0 + $0x8] sm:$0xff]
    %v39 = vld [vmem:[%s0 + $0x10] sm:$0xff]
    %v40 = vld [vmem:[%s0 + $0x18] sm:$0xff]
    %v41 = vld [vmem:[%s0 + $0x20] sm:$0xff]
    %v42 = vld [vmem:[%s0 + $0x28] sm:$0xff]
    %v43 = vld [vmem:[%s0 + $0x30] sm:$0xff]
    %v44 = vld [vmem:[%s0 + $0x38] sm:$0xff]
    %v45 = vld [vmem:[#allocation3] sm:$0xf]
    %v46 = vld [vmem:[#allocation3 + $0x4] sm:$0xf]
    %v47 = vld [vmem:[#allocation3 + $0x8] sm:$0xf]
    %v48 = vld [vmem:[#allocation3 + $0xc] sm:$0xf]
    %v49 = vld [vmem:[#allocation3 + $0x10] sm:$0xf]
    %v50 = vld [vmem:[#allocation3 + $0x14] sm:$0xf]
    %v51 = vld [vmem:[#allocation3 + $0x18] sm:$0xf]
    %v52 = vld [vmem:[#allocation3 + $0x1c] sm:$0xf]
    %v53 = vld [vmem:[#allocation3 + $0x20] sm:$0xf]
    %v54 = vld [vmem:[#allocation3 + $0x24] sm:$0xf]
    %v55 = vld [vmem:[#allocation3 + $0x28] sm:$0xf]
    %v56 = vld [vmem:[#allocation3 + $0x2c] sm:$0xf]
    %v57 = vld [vmem:[#allocation3 + $0x30] sm:$0xf]
    %v58 = vld [vmem:[#allocation3 + $0x34] sm:$0xf]
    %v59 = vld [vmem:[#allocation3 + $0x38] sm:$0xf]
    %v60 = vld [vmem:[#allocation3 + $0x3c] sm:$0xf]
    %v61 = vld [vmem:[#allocation3 + $0x40] sm:$0xf]
    %v62 = vld [vmem:[#allocation3 + $0x44] sm:$0xf]
    %v63 = vld [vmem:[#allocation3 + $0x48] sm:$0xf]
    %v64 = vld [vmem:[#allocation3 + $0x4c] sm:$0xf]
    %v65 = vld [vmem:[#allocation3 + $0x50] sm:$0xf]
    %v66 = vld [vmem:[#allocation3 + $0x54] sm:$0xf]
    %v67 = vld [vmem:[#allocation3 + $0x58] sm:$0xf]
    %v68 = vld [vmem:[#allocation3 + $0x5c] sm:$0xf]
    %v69 = vld [vmem:[#allocation3 + $0x60] sm:$0xf]
    %v70 = vld [vmem:[#allocation3 + $0x64] sm:$0xf]
    %v71 = vld [vmem:[#allocation3 + $0x68] sm:$0xf]
    %v72 = vld [vmem:[#allocation3 + $0x6c] sm:$0xf]
    %v73 = vld [vmem:[#allocation3 + $0x70] sm:$0xf]
    %v74 = vld [vmem:[#allocation3 + $0x74] sm:$0xf]
    %v75 = vld [vmem:[#allocation3 + $0x78] sm:$0xf]
    %v76 = vld [vmem:[#allocation3 + $0x7c] sm:$0xf]
    %v77 = vld [vmem:[#allocation3 + $0x80] sm:$0xf]
    %v78 = vld [vmem:[#allocation3 + $0x84] sm:$0xf]
    %v79 = vld [vmem:[#allocation3 + $0x88] sm:$0xf]
    %v80 = vld [vmem:[#allocation3 + $0x8c] sm:$0xf]
    %v81 = vld [vmem:[#allocation3 + $0x90] sm:$0xf]
    %v82 = vld [vmem:[#allocation3 + $0x94] sm:$0xf]
    %v83 = vld [vmem:[#allocation3 + $0x98] sm:$0xf]
    %v84 = vld [vmem:[#allocation3 + $0x9c] sm:$0xf]
    %v85 = vld [vmem:[#allocation3 + $0xa0] sm:$0xf]
    %v86 = vld [vmem:[#allocation3 + $0xa4] sm:$0xf]
    %v87 = vld [vmem:[#allocation3 + $0xa8] sm:$0xf]
    %v88 = vld [vmem:[#allocation3 + $0xac] sm:$0xf]
    %v89 = vld [vmem:[#allocation3 + $0xb0] sm:$0xf]
    %v90 = vld [vmem:[#allocation3 + $0xb4] sm:$0xf]
    %v91 = vld [vmem:[#allocation3 + $0xb8] sm:$0xf]
    %v92 = vld [vmem:[#allocation3 + $0xbc] sm:$0xf]
    %v93 = vld [vmem:[#allocation3 + $0xc0] sm:$0xf]
    %v94 = vld [vmem:[#allocation3 + $0xc4] sm:$0xf]
    %v95 = vld [vmem:[#allocation3 + $0xc8] sm:$0xf]
    %v96 = vld [vmem:[#allocation3 + $0xcc] sm:$0xf]
    %v97 = vld [vmem:[#allocation3 + $0xd0] sm:$0xf]
    %v98 = vld [vmem:[#allocation3 + $0xd4] sm:$0xf]
    %v99 = vld [vmem:[#allocation3 + $0xd8] sm:$0xf]
    %v100 = vld [vmem:[#allocation3 + $0xdc] sm:$0xf]
    %v101 = vld [vmem:[#allocation3 + $0xe0] sm:$0xf]
    %v102 = vld [vmem:[#allocation3 + $0xe4] sm:$0xf]
    %v103 = vld [vmem:[#allocation3 + $0xe8] sm:$0xf]
    %v104 = vld [vmem:[#allocation3 + $0xec] sm:$0xf]
    %v105 = vld [vmem:[#allocation3 + $0xf0] sm:$0xf]
    %v106 = vld [vmem:[#allocation3 + $0xf4] sm:$0xf]
    %v107 = vld [vmem:[#allocation3 + $0xf8] sm:$0xf]
    %v108 = vld [vmem:[#allocation3 + $0xfc] sm:$0xf]
    %v109 = vld [vmem:[#allocation3 + $0x100] sm:$0xf]
    %v110 = vld [vmem:[#allocation3 + $0x104] sm:$0xf]
    %v111 = vld [vmem:[#allocation3 + $0x108] sm:$0xf]
    %v112 = vld [vmem:[#allocation3 + $0x10c] sm:$0xf]
    %v113 = vld [vmem:[#allocation3 + $0x110] sm:$0xf]
    %v114 = vld [vmem:[#allocation3 + $0x114] sm:$0xf]
    %v115 = vld [vmem:[#allocation3 + $0x118] sm:$0xf]
    %v116 = vld [vmem:[#allocation3 + $0x11c] sm:$0xf]
    %v117 = vld [vmem:[#allocation3 + $0x120] sm:$0xf]
    %v118 = vld [vmem:[#allocation3 + $0x124] sm:$0xf]
    %v119 = vld [vmem:[#allocation3 + $0x128] sm:$0xf]
    %v120 = vld [vmem:[#allocation3 + $0x12c] sm:$0xf]
    %v121 = vld [vmem:[#allocation3 + $0x130] sm:$0xf]
    %v122 = vld [vmem:[#allocation3 + $0x134] sm:$0xf]
    %v123 = vld [vmem:[#allocation3 + $0x138] sm:$0xf]
    %v124 = vld [vmem:[#allocation3 + $0x13c] sm:$0xf]
    %v125 = vld [vmem:[#allocation3 + $0x140] sm:$0xf]
    %v126 = vld [vmem:[#allocation3 + $0x144] sm:$0xf]
    %v127 = vld [vmem:[#allocation3 + $0x148] sm:$0xf]
    %v128 = vld [vmem:[#allocation3 + $0x14c] sm:$0xf]
    %v129 = vld [vmem:[#allocation3 + $0x150] sm:$0xf]
    %v130 = vld [vmem:[#allocation3 + $0x154] sm:$0xf]
    %v131 = vld [vmem:[#allocation3 + $0x158] sm:$0xf]
    %v132 = vld [vmem:[#allocation3 + $0x15c] sm:$0xf]
    %v133 = vld [vmem:[#allocation3 + $0x160] sm:$0xf]
    %v134 = vld [vmem:[#allocation3 + $0x164] sm:$0xf]
    %v135 = vld [vmem:[#allocation3 + $0x168] sm:$0xf]
    %v136 = vld [vmem:[#allocation3 + $0x16c] sm:$0xf]
    %v137 = vld [vmem:[#allocation3 + $0x170] sm:$0xf]
    %v138 = vld [vmem:[#allocation3 + $0x174] sm:$0xf]
    %v139 = vld [vmem:[#allocation3 + $0x178] sm:$0xf]
    %v140 = vld [vmem:[#allocation3 + $0x17c] sm:$0xf]
    %v141 = vld [vmem:[#allocation3 + $0x180] sm:$0xf]
    %v142 = vld [vmem:[#allocation3 + $0x184] sm:$0xf]
    %v143 = vld [vmem:[#allocation3 + $0x188] sm:$0xf]
    %v144 = vld [vmem:[#allocation3 + $0x18c] sm:$0xf]
    %v145 = vld [vmem:[#allocation3 + $0x190] sm:$0xf]
    %v146 = vld [vmem:[#allocation3 + $0x194] sm:$0xf]
    %v147 = vld [vmem:[#allocation3 + $0x198] sm:$0xf]
    %v148 = vld [vmem:[#allocation3 + $0x19c] sm:$0xf]
    %v149 = vld [vmem:[#allocation3 + $0x1a0] sm:$0xf]
    %v150 = vld [vmem:[#allocation3 + $0x1a4] sm:$0xf]
    %v151 = vld [vmem:[#allocation3 + $0x1a8] sm:$0xf]
    %v152 = vld [vmem:[#allocation3 + $0x1ac] sm:$0xf]
    %v153 = vld [vmem:[#allocation3 + $0x1b0] sm:$0xf]
    %v154 = vld [vmem:[#allocation3 + $0x1b4] sm:$0xf]
    %v155 = vld [vmem:[#allocation3 + $0x1b8] sm:$0xf]
    %v156 = vld [vmem:[#allocation3 + $0x1bc] sm:$0xf]
    %v157 = vld [vmem:[#allocation3 + $0x1c0] sm:$0xf]
    %v158 = vld [vmem:[#allocation3 + $0x1c4] sm:$0xf]
    %v159 = vld [vmem:[#allocation3 + $0x1c8] sm:$0xf]
    %v160 = vld [vmem:[#allocation3 + $0x1cc] sm:$0xf]
    %v161 = vld [vmem:[#allocation3 + $0x1d0] sm:$0xf]
    %v162 = vld [vmem:[#allocation3 + $0x1d4] sm:$0xf]
    %v163 = vld [vmem:[#allocation3 + $0x1d8] sm:$0xf]
    %v164 = vld [vmem:[#allocation3 + $0x1dc] sm:$0xf]
    %v165 = vld [vmem:[#allocation3 + $0x1e0] sm:$0xf]
    %v166 = vld [vmem:[#allocation3 + $0x1e4] sm:$0xf]
    %v167 = vld [vmem:[#allocation3 + $0x1e8] sm:$0xf]
    %v168 = vld [vmem:[#allocation3 + $0x1ec] sm:$0xf]
    %v169 = vld [vmem:[#allocation3 + $0x1f0] sm:$0xf]
    %v170 = vld [vmem:[#allocation3 + $0x1f4] sm:$0xf]
    %v171 = vld [vmem:[#allocation3 + $0x1f8] sm:$0xf]
    %v172 = vld [vmem:[#allocation3 + $0x1fc] sm:$0xf]
    %v181 = vunpack.c.l.b16 %v37
    %v182 = vunpack.c.h.b16 %v37
    %v183 = vunpack.c.l.b16 %v38
    %v184 = vunpack.c.h.b16 %v38
    %v185 = vunpack.c.l.b16 %v39
    %v186 = vunpack.c.h.b16 %v39
    %v187 = vunpack.c.l.b16 %v40
    %v188 = vunpack.c.h.b16 %v40
    %v189 = vunpack.c.l.b16 %v41
    %v190 = vunpack.c.h.b16 %v41
    %v191 = vunpack.c.l.b16 %v42
    %v192 = vunpack.c.h.b16 %v42
    %v193 = vunpack.c.l.b16 %v43
    %v194 = vunpack.c.h.b16 %v43
    %v195 = vunpack.c.l.b16 %v44
    %v196 = vunpack.c.h.b16 %v44
    %v197 = vpack.c.b16 %v189, %v181
    %v198 = vpack.c.b16 %v190, %v182
    %v199 = vpack.c.b16 %v191, %v183
    %v200 = vpack.c.b16 %v192, %v184
    %v201 = vpack.c.b16 %v193, %v185
    %v202 = vpack.c.b16 %v194, %v186
    %v203 = vpack.c.b16 %v195, %v187
    %v204 = vpack.c.b16 %v196, %v188
    %v341 = vunpack.c.l.b16 %v45
    %v342 = vunpack.c.l.b16 %v46
    %v343 = vunpack.c.l.b16 %v47
    %v344 = vunpack.c.l.b16 %v48
    %v345 = vunpack.c.l.b16 %v49
    %v346 = vunpack.c.l.b16 %v50
    %v347 = vunpack.c.l.b16 %v51
    %v348 = vunpack.c.l.b16 %v52
    %v349 = vunpack.c.l.b16 %v53
    %v350 = vunpack.c.l.b16 %v54
    %v351 = vunpack.c.l.b16 %v55
    %v352 = vunpack.c.l.b16 %v56
    %v353 = vunpack.c.l.b16 %v57
    %v354 = vunpack.c.l.b16 %v58
    %v355 = vunpack.c.l.b16 %v59
    %v356 = vunpack.c.l.b16 %v60
    %v357 = vunpack.c.l.b16 %v61
    %v358 = vunpack.c.l.b16 %v62
    %v359 = vunpack.c.l.b16 %v63
    %v360 = vunpack.c.l.b16 %v64
    %v361 = vunpack.c.l.b16 %v65
    %v362 = vunpack.c.l.b16 %v66
    %v363 = vunpack.c.l.b16 %v67
    %v364 = vunpack.c.l.b16 %v68
    %v365 = vunpack.c.l.b16 %v69
    %v366 = vunpack.c.l.b16 %v70
    %v367 = vunpack.c.l.b16 %v71
    %v368 = vunpack.c.l.b16 %v72
    %v369 = vunpack.c.l.b16 %v73
    %v370 = vunpack.c.l.b16 %v74
    %v371 = vunpack.c.l.b16 %v75
    %v372 = vunpack.c.l.b16 %v76
    %v373 = vunpack.c.l.b16 %v77
    %v374 = vunpack.c.l.b16 %v78
    %v375 = vunpack.c.l.b16 %v79
    %v376 = vunpack.c.l.b16 %v80
    %v377 = vunpack.c.l.b16 %v81
    %v378 = vunpack.c.l.b16 %v82
    %v379 = vunpack.c.l.b16 %v83
    %v380 = vunpack.c.l.b16 %v84
    %v381 = vunpack.c.l.b16 %v85
    %v382 = vunpack.c.l.b16 %v86
    %v383 = vunpack.c.l.b16 %v87
    %v384 = vunpack.c.l.b16 %v88
    %v385 = vunpack.c.l.b16 %v89
    %v386 = vunpack.c.l.b16 %v90
    %v387 = vunpack.c.l.b16 %v91
    %v388 = vunpack.c.l.b16 %v92
    %v389 = vunpack.c.l.b16 %v93
    %v390 = vunpack.c.l.b16 %v94
    %v391 = vunpack.c.l.b16 %v95
    %v392 = vunpack.c.l.b16 %v96
    %v393 = vunpack.c.l.b16 %v97
    %v394 = vunpack.c.l.b16 %v98
    %v395 = vunpack.c.l.b16 %v99
    %v396 = vunpack.c.l.b16 %v100
    %v397 = vunpack.c.l.b16 %v101
    %v398 = vunpack.c.l.b16 %v102
    %v399 = vunpack.c.l.b16 %v103
    %v400 = vunpack.c.l.b16 %v104
    %v401 = vunpack.c.l.b16 %v105
    %v402 = vunpack.c.l.b16 %v106
    %v403 = vunpack.c.l.b16 %v107
    %v404 = vunpack.c.l.b16 %v108
    %v405 = vunpack.c.l.b16 %v109
    %v406 = vunpack.c.l.b16 %v110
    %v407 = vunpack.c.l.b16 %v111
    %v408 = vunpack.c.l.b16 %v112
    %v409 = vunpack.c.l.b16 %v113
    %v410 = vunpack.c.l.b16 %v114
    %v411 = vunpack.c.l.b16 %v115
    %v412 = vunpack.c.l.b16 %v116
    %v413 = vunpack.c.l.b16 %v117
    %v414 = vunpack.c.l.b16 %v118
    %v415 = vunpack.c.l.b16 %v119
    %v416 = vunpack.c.l.b16 %v120
    %v417 = vunpack.c.l.b16 %v121
    %v418 = vunpack.c.l.b16 %v122
    %v419 = vunpack.c.l.b16 %v123
    %v420 = vunpack.c.l.b16 %v124
    %v421 = vunpack.c.l.b16 %v125
    %v422 = vunpack.c.l.b16 %v126
    %v423 = vunpack.c.l.b16 %v127
    %v424 = vunpack.c.l.b16 %v128
    %v425 = vunpack.c.l.b16 %v129
    %v426 = vunpack.c.l.b16 %v130
    %v427 = vunpack.c.l.b16 %v131
    %v428 = vunpack.c.l.b16 %v132
    %v429 = vunpack.c.l.b16 %v133
    %v430 = vunpack.c.l.b16 %v134
    %v431 = vunpack.c.l.b16 %v135
    %v432 = vunpack.c.l.b16 %v136
    %v433 = vunpack.c.l.b16 %v137
    %v434 = vunpack.c.l.b16 %v138
    %v435 = vunpack.c.l.b16 %v139
    %v436 = vunpack.c.l.b16 %v140
    %v437 = vunpack.c.l.b16 %v141
    %v438 = vunpack.c.l.b16 %v142
    %v439 = vunpack.c.l.b16 %v143
    %v440 = vunpack.c.l.b16 %v144
    %v441 = vunpack.c.l.b16 %v145
    %v442 = vunpack.c.l.b16 %v146
    %v443 = vunpack.c.l.b16 %v147
    %v444 = vunpack.c.l.b16 %v148
    %v445 = vunpack.c.l.b16 %v149
    %v446 = vunpack.c.l.b16 %v150
    %v447 = vunpack.c.l.b16 %v151
    %v448 = vunpack.c.l.b16 %v152
    %v449 = vunpack.c.l.b16 %v153
    %v450 = vunpack.c.l.b16 %v154
    %v451 = vunpack.c.l.b16 %v155
    %v452 = vunpack.c.l.b16 %v156
    %v453 = vunpack.c.l.b16 %v157
    %v454 = vunpack.c.l.b16 %v158
    %v455 = vunpack.c.l.b16 %v159
    %v456 = vunpack.c.l.b16 %v160
    %v457 = vunpack.c.l.b16 %v161
    %v458 = vunpack.c.l.b16 %v162
    %v459 = vunpack.c.l.b16 %v163
    %v460 = vunpack.c.l.b16 %v164
    %v461 = vunpack.c.l.b16 %v165
    %v462 = vunpack.c.l.b16 %v166
    %v463 = vunpack.c.l.b16 %v167
    %v464 = vunpack.c.l.b16 %v168
    %v465 = vunpack.c.l.b16 %v169
    %v466 = vunpack.c.l.b16 %v170
    %v467 = vunpack.c.l.b16 %v171
    %v468 = vunpack.c.l.b16 %v172
    %v469 = vpack.c.b16 %v342, %v341
    %v470 = vpack.c.b16 %v344, %v343
    %v471 = vpack.c.b16 %v346, %v345
    %v472 = vpack.c.b16 %v348, %v347
    %v473 = vpack.c.b16 %v350, %v349
    %v474 = vpack.c.b16 %v352, %v351
    %v475 = vpack.c.b16 %v354, %v353
    %v476 = vpack.c.b16 %v356, %v355
    %v477 = vpack.c.b16 %v358, %v357
    %v478 = vpack.c.b16 %v360, %v359
    %v479 = vpack.c.b16 %v362, %v361
    %v480 = vpack.c.b16 %v364, %v363
    %v481 = vpack.c.b16 %v366, %v365
    %v482 = vpack.c.b16 %v368, %v367
    %v483 = vpack.c.b16 %v370, %v369
    %v484 = vpack.c.b16 %v372, %v371
    %v485 = vpack.c.b16 %v374, %v373
    %v486 = vpack.c.b16 %v376, %v375
    %v487 = vpack.c.b16 %v378, %v377
    %v488 = vpack.c.b16 %v380, %v379
    %v489 = vpack.c.b16 %v382, %v381
    %v490 = vpack.c.b16 %v384, %v383
    %v491 = vpack.c.b16 %v386, %v385
    %v492 = vpack.c.b16 %v388, %v387
    %v493 = vpack.c.b16 %v390, %v389
    %v494 = vpack.c.b16 %v392, %v391
    %v495 = vpack.c.b16 %v394, %v393
    %v496 = vpack.c.b16 %v396, %v395
    %v497 = vpack.c.b16 %v398, %v397
    %v498 = vpack.c.b16 %v400, %v399
    %v499 = vpack.c.b16 %v402, %v401
    %v500 = vpack.c.b16 %v404, %v403
    %v501 = vpack.c.b16 %v406, %v405
    %v502 = vpack.c.b16 %v408, %v407
    %v503 = vpack.c.b16 %v410, %v409
    %v504 = vpack.c.b16 %v412, %v411
    %v505 = vpack.c.b16 %v414, %v413
    %v506 = vpack.c.b16 %v416, %v415
    %v507 = vpack.c.b16 %v418, %v417
    %v508 = vpack.c.b16 %v420, %v419
    %v509 = vpack.c.b16 %v422, %v421
    %v510 = vpack.c.b16 %v424, %v423
    %v511 = vpack.c.b16 %v426, %v425
    %v512 = vpack.c.b16 %v428, %v427
    %v513 = vpack.c.b16 %v430, %v429
    %v514 = vpack.c.b16 %v432, %v431
    %v515 = vpack.c.b16 %v434, %v433
    %v516 = vpack.c.b16 %v436, %v435
    %v517 = vpack.c.b16 %v438, %v437
    %v518 = vpack.c.b16 %v440, %v439
    %v519 = vpack.c.b16 %v442, %v441
    %v520 = vpack.c.b16 %v444, %v443
    %v521 = vpack.c.b16 %v446, %v445
    %v522 = vpack.c.b16 %v448, %v447
    %v523 = vpack.c.b16 %v450, %v449
    %v524 = vpack.c.b16 %v452, %v451
    %v525 = vpack.c.b16 %v454, %v453
    %v526 = vpack.c.b16 %v456, %v455
    %v527 = vpack.c.b16 %v458, %v457
    %v528 = vpack.c.b16 %v460, %v459
    %v529 = vpack.c.b16 %v462, %v461
    %v530 = vpack.c.b16 %v464, %v463
    %v531 = vpack.c.b16 %v466, %v465
    %v532 = vpack.c.b16 %v468, %v467
    %597 = vmatprep.subr.bf16.mxu0 0
    %598 = vmatpush1.bf16.msra.mxu0 %v469
    %599 = vmatprep.subr.bf16.mxu0 0
    %600 = vmatpush1.bf16.msra.mxu0 %v470
    %601 = vmatprep.subr.bf16.mxu0 0
    %602 = vmatpush1.bf16.msra.mxu0 %v471
    %603 = vmatprep.subr.bf16.mxu0 0
    %604 = vmatpush1.bf16.msra.mxu0 %v472
    %605 = vmatprep.subr.bf16.mxu0 0
    %606 = vmatpush1.bf16.msra.mxu0 %v473
    %607 = vmatprep.subr.bf16.mxu0 0
    %608 = vmatpush1.bf16.msra.mxu0 %v474
    %609 = vmatprep.subr.bf16.mxu0 0
    %610 = vmatpush1.bf16.msra.mxu0 %v475
    %611 = vmatprep.subr.bf16.mxu0 0
    %612 = vmatpush1.bf16.msra.mxu0 %v476
    %613 = vmatprep.subr.bf16.mxu0 0
    %614 = vmatpush1.bf16.msra.mxu0 %v477
    %615 = vmatprep.subr.bf16.mxu0 0
    %616 = vmatpush1.bf16.msra.mxu0 %v478
    %617 = vmatprep.subr.bf16.mxu0 0
    %618 = vmatpush1.bf16.msra.mxu0 %v479
    %619 = vmatprep.subr.bf16.mxu0 0
    %620 = vmatpush1.bf16.msra.mxu0 %v480
    %621 = vmatprep.subr.bf16.mxu0 0
    %622 = vmatpush1.bf16.msra.mxu0 %v481
    %623 = vmatprep.subr.bf16.mxu0 0
    %624 = vmatpush1.bf16.msra.mxu0 %v482
    %625 = vmatprep.subr.bf16.mxu0 0
    %626 = vmatpush1.bf16.msra.mxu0 %v483
    %627 = vmatprep.subr.bf16.mxu0 0
    %628 = vmatpush1.bf16.msra.mxu0 %v484
    %629 = vmatprep.mubr.bf16.mxu0 %v198
    %630 = vmatmul.mubr.bf16.gmra.mrb[0].mxu0 %v197
    %v631 = vpop.f32.mrb[0].mxu0
    %v632 = vadd.f32 0.0, %v631
    %v633 = vpop.f32.mrb[0].mxu0
    %v634 = vpop.f32.mrb[0].mxu0
    %v635 = vadd.f32 0.0, %v634
    %v636 = vpop.f32.mrb[0].mxu0
    %637 = vdwg.mxu0
    %638 = vmatprep.subr.bf16.mxu0 0
    %639 = vmatpush1.bf16.msra.mxu0 %v485
    %640 = vmatprep.subr.bf16.mxu0 0
    %641 = vmatpush1.bf16.msra.mxu0 %v486
    %642 = vmatprep.subr.bf16.mxu0 0
    %643 = vmatpush1.bf16.msra.mxu0 %v487
    %644 = vmatprep.subr.bf16.mxu0 0
    %645 = vmatpush1.bf16.msra.mxu0 %v488
    %646 = vmatprep.subr.bf16.mxu0 0
    %647 = vmatpush1.bf16.msra.mxu0 %v489
    %648 = vmatprep.subr.bf16.mxu0 0
    %649 = vmatpush1.bf16.msra.mxu0 %v490
    %650 = vmatprep.subr.bf16.mxu0 0
    %651 = vmatpush1.bf16.msra.mxu0 %v491
    %652 = vmatprep.subr.bf16.mxu0 0
    %653 = vmatpush1.bf16.msra.mxu0 %v492
    %654 = vmatprep.subr.bf16.mxu0 0
    %655 = vmatpush1.bf16.msra.mxu0 %v493
    %656 = vmatprep.subr.bf16.mxu0 0
    %657 = vmatpush1.bf16.msra.mxu0 %v494
    %658 = vmatprep.subr.bf16.mxu0 0
    %659 = vmatpush1.bf16.msra.mxu0 %v495
    %660 = vmatprep.subr.bf16.mxu0 0
    %661 = vmatpush1.bf16.msra.mxu0 %v496
    %662 = vmatprep.subr.bf16.mxu0 0
    %663 = vmatpush1.bf16.msra.mxu0 %v497
    %664 = vmatprep.subr.bf16.mxu0 0
    %665 = vmatpush1.bf16.msra.mxu0 %v498
    %666 = vmatprep.subr.bf16.mxu0 0
    %667 = vmatpush1.bf16.msra.mxu0 %v499
    %668 = vmatprep.subr.bf16.mxu0 0
    %669 = vmatpush1.bf16.msra.mxu0 %v500
    %670 = vmatprep.mubr.bf16.mxu0 %v200
    %671 = vmatmul.mubr.bf16.gmra.mrb[0].mxu0 %v199
    %v672 = vpop.f32.mrb[0].mxu0
    %v673 = vadd.f32 %v632, %v672
    %v674 = vpop.f32.mrb[0].mxu0
    %v675 = vpop.f32.mrb[0].mxu0
    %v676 = vadd.f32 %v635, %v675
    %v677 = vpop.f32.mrb[0].mxu0
    %678 = vdwg.mxu0
    %679 = vmatprep.subr.bf16.mxu0 0
    %680 = vmatpush1.bf16.msra.mxu0 %v501
    %681 = vmatprep.subr.bf16.mxu0 0
    %682 = vmatpush1.bf16.msra.mxu0 %v502
    %683 = vmatprep.subr.bf16.mxu0 0
    %684 = vmatpush1.bf16.msra.mxu0 %v503
    %685 = vmatprep.subr.bf16.mxu0 0
    %686 = vmatpush1.bf16.msra.mxu0 %v504
    %687 = vmatprep.subr.bf16.mxu0 0
    %688 = vmatpush1.bf16.msra.mxu0 %v505
    %689 = vmatprep.subr.bf16.mxu0 0
    %690 = vmatpush1.bf16.msra.mxu0 %v506
    %691 = vmatprep.subr.bf16.mxu0 0
    %692 = vmatpush1.bf16.msra.mxu0 %v507
    %693 = vmatprep.subr.bf16.mxu0 0
    %694 = vmatpush1.bf16.msra.mxu0 %v508
    %695 = vmatprep.subr.bf16.mxu0 0
    %696 = vmatpush1.bf16.msra.mxu0 %v509
    %697 = vmatprep.subr.bf16.mxu0 0
    %698 = vmatpush1.bf16.msra.mxu0 %v510
    %699 = vmatprep.subr.bf16.mxu0 0
    %700 = vmatpush1.bf16.msra.mxu0 %v511
    %701 = vmatprep.subr.bf16.mxu0 0
    %702 = vmatpush1.bf16.msra.mxu0 %v512
    %703 = vmatprep.subr.bf16.mxu0 0
    %704 = vmatpush1.bf16.msra.mxu0 %v513
    %705 = vmatprep.subr.bf16.mxu0 0
    %706 = vmatpush1.bf16.msra.mxu0 %v514
    %707 = vmatprep.subr.bf16.mxu0 0
    %708 = vmatpush1.bf16.msra.mxu0 %v515
    %709 = vmatprep.subr.bf16.mxu0 0
    %710 = vmatpush1.bf16.msra.mxu0 %v516
    %711 = vmatprep.mubr.bf16.mxu0 %v202
    %712 = vmatmul.mubr.bf16.gmra.mrb[0].mxu0 %v201
    %v713 = vpop.f32.mrb[0].mxu0
    %v714 = vadd.f32 %v673, %v713
    %v715 = vpop.f32.mrb[0].mxu0
    %v716 = vpop.f32.mrb[0].mxu0
    %v717 = vadd.f32 %v676, %v716
    %v718 = vpop.f32.mrb[0].mxu0
    %719 = vdwg.mxu0
    %720 = vmatprep.subr.bf16.mxu0 0
    %721 = vmatpush1.bf16.msra.mxu0 %v517
    %722 = vmatprep.subr.bf16.mxu0 0
    %723 = vmatpush1.bf16.msra.mxu0 %v518
    %724 = vmatprep.subr.bf16.mxu0 0
    %725 = vmatpush1.bf16.msra.mxu0 %v519
    %726 = vmatprep.subr.bf16.mxu0 0
    %727 = vmatpush1.bf16.msra.mxu0 %v520
    %728 = vmatprep.subr.bf16.mxu0 0
    %729 = vmatpush1.bf16.msra.mxu0 %v521
    %730 = vmatprep.subr.bf16.mxu0 0
    %731 = vmatpush1.bf16.msra.mxu0 %v522
    %732 = vmatprep.subr.bf16.mxu0 0
    %733 = vmatpush1.bf16.msra.mxu0 %v523
    %734 = vmatprep.subr.bf16.mxu0 0
    %735 = vmatpush1.bf16.msra.mxu0 %v524
    %736 = vmatprep.subr.bf16.mxu0 0
    %737 = vmatpush1.bf16.msra.mxu0 %v525
    %738 = vmatprep.subr.bf16.mxu0 0
    %739 = vmatpush1.bf16.msra.mxu0 %v526
    %740 = vmatprep.subr.bf16.mxu0 0
    %741 = vmatpush1.bf16.msra.mxu0 %v527
    %742 = vmatprep.subr.bf16.mxu0 0
    %743 = vmatpush1.bf16.msra.mxu0 %v528
    %744 = vmatprep.subr.bf16.mxu0 0
    %745 = vmatpush1.bf16.msra.mxu0 %v529
    %746 = vmatprep.subr.bf16.mxu0 0
    %747 = vmatpush1.bf16.msra.mxu0 %v530
    %748 = vmatprep.subr.bf16.mxu0 0
    %749 = vmatpush1.bf16.msra.mxu0 %v531
    %750 = vmatprep.subr.bf16.mxu0 0
    %751 = vmatpush1.bf16.msra.mxu0 %v532
    %752 = vmatprep.mubr.bf16.mxu0 %v204
    %753 = vmatmul.mubr.bf16.gmra.mrb[0].mxu0 %v203
    %v754 = vpop.f32.mrb[0].mxu0
    %v755 = vadd.f32 %v714, %v754
    %v756 = vpop.f32.mrb[0].mxu0
    %v757 = vpop.f32.mrb[0].mxu0
    %v758 = vadd.f32 %v717, %v757
    %v759 = vpop.f32.mrb[0].mxu0
    %760 = vdwg.mxu0
    %v761 = vadd.f32 %v35, %v755
    %v762 = vadd.f32 %v36, %v758
    %763 = vst [vmem:[#allocation2] sm:$0xff] %v761
    %764 = vst [vmem:[#allocation2 + $0x8] sm:$0xff] %v762
    // Predicated region
    $region22: #{_forward_impl.2} parent=1 // pred_check
      %p765 = pneg %p29
    $region23: #{_forward_impl.2} parent=1 // pred_check_branch
      %767 = sbr.rel (%p765) target = $region25
    $region24: #{_forward_impl.2} parent=1 // pred_region
      %v768 = vld [vmem:[#allocation2] sm:$0xff]
      %v769 = vld [vmem:[#allocation2 + $0x8] sm:$0xff]
      %v770 = vld [vmem:[%s2] sm:$0x1]
      %v772 = vlaneseq
      %v773 = vshrl.u32 %v772, 7
      %v774 = vsub.s32 0, %v773
      %v775 = vrot.slane %v770, %v774
      %v777 = vadd.f32 %v768, %v775
      %v778 = vadd.f32 %v769, %v775
      %v779 = vpack.c.bf16 %v778, %v777
      %v781 = vunpack.c.l.b16 %v779
      %v782 = vunpack.c.h.b16 %v779
      %v783 = vpack.c.b16 %v781, %v781
      %v784 = vpack.c.b16 %v782, %v782
      %787 = vst [vmem:[%s3] sm:$0xf] %v783
      %788 = vst [vmem:[%s3 + $0x4] sm:$0xf] %v784
    $region25: #{_forward_impl.2} parent=1 // pred_fallthru
      _
    // Predicated region
    $region26: #{_forward_impl.2} parent=1 // pred_check
      _
    $region27: #{_forward_impl.2} parent=1 // pred_check_branch
      %790 = sbr.rel (0) target = $region29
    $region28: #{_forward_impl.2} parent=1 // pred_region
      _
    $region29: #{_forward_impl.2} parent=1 // pred_fallthru
      _
    // Predicated region
    $region30: #{_forward_impl.2} parent=1 // pred_check
      _
    $region31: #{_forward_impl.2} parent=1 // pred_check_branch
      %792 = sbr.rel (0) target = $region33
    $region32: #{_forward_impl.2} parent=1 // pred_region
      _
    $region33: #{_forward_impl.2} parent=1 // pred_fallthru
      _
    %793 = vsyncpa [#allocation4], 1

// kernel: _forward_impl.3
$region0: #{_forward_impl.3}
  #allocation0 [shape = 'u32[]', space=smem, size = 0x4, offset = 0x4, fixed_abs, tag = 'smem constant byte address 0x4 - core index']
  #allocation1 [shape = 'u32[144,128]{1,0:T(1,128)}', space=vmem, size = 0x12000, scoped, tag = 'internal scratch']
  #allocation2 [shape = 'f32[1]{0:T(128)S(6)}', space=smem, size = 0x200, scoped, tag = 'scoped memory for _forward_impl.3']
  %s0 = inlined_call_operand.<no memory space> [shape: f32[1], index: 0, kind: input, shape index: {}]
  %s1 = inlined_call_operand.vmem [shape: bf16[16,128], index: 1, kind: input, shape index: {}]
  %s2 = inlined_call_operand.vmem [shape: bf16[128,128], index: 2, kind: input, shape index: {}]
  %s3 = inlined_call_operand.vmem [shape: f32[1,128], index: 3, kind: input, shape index: {}]
  %s4 = inlined_call_operand.vmem [shape: f32[16,128], index: 4, kind: input, shape index: {}]
  %s5 = inlined_call_operand.hbm [shape: f32[1,1], index: 5, kind: output, shape index: {0}]
  %s6 = inlined_call_operand.vmem [shape: f32[16,128], index: 6, kind: output, shape index: {1}]
  %7 = xla_tuple %s5, %s6
  %s8 = sld [smem:[#allocation0]]
  $region38: #{_forward_impl.3} parent=0
    _
  %s10 = ssub.s32 1, %s8
  %s11 = scalar_select 0, %s10, %s8
  %12 = sst [smem:[#allocation2]] %s0
  $region1: #{_forward_impl.3} parent=0
    #allocation3 [shape = 'u8[512]{0}', space=vmem, size = 0x400, scoped, tag = 'output window, operand 0, single buffered']
    #allocation4 [shape = 's32[1]{0}', space=sflag, size = 0x4, scoped, tag = 'scoped memory for _forward_impl.3']
    %13 = vsyncpa [#allocation4], 0
    // Predicated region
    $region2: #{_forward_impl.3} parent=1 // pred_check
      _
    $region3: #{_forward_impl.3} parent=1 // pred_check_branch
      %15 = sbr.rel (0) target = $region5
    $region4: #{_forward_impl.3} parent=1 // pred_region
      _
    $region5: #{_forward_impl.3} parent=1 // pred_fallthru
      _
    // Predicated region
    $region6: #{_forward_impl.3} parent=1 // pred_check
      _
    $region7: #{_forward_impl.3} parent=1 // pred_check_branch
      %17 = sbr.rel (0) target = $region9
    $region8: #{_forward_impl.3} parent=1 // pred_region
      _
    $region9: #{_forward_impl.3} parent=1 // pred_fallthru
      _
    // Predicated region
    $region10: #{_forward_impl.3} parent=1 // pred_check
      _
    $region11: #{_forward_impl.3} parent=1 // pred_check_branch
      %19 = sbr.rel (0) target = $region13
    $region12: #{_forward_impl.3} parent=1 // pred_region
      _
    $region13: #{_forward_impl.3} parent=1 // pred_fallthru
      _
    // Predicated region
    $region14: #{_forward_impl.3} parent=1 // pred_check
      _
    $region15: #{_forward_impl.3} parent=1 // pred_check_branch
      %21 = sbr.rel (0) target = $region17
    $region16: #{_forward_impl.3} parent=1 // pred_region
      _
    $region17: #{_forward_impl.3} parent=1 // pred_fallthru
      _
    // Predicated region
    $region18: #{_forward_impl.3} parent=1 // pred_check
      _
    $region19: #{_forward_impl.3} parent=1 // pred_check_branch
      %23 = sbr.rel (0) target = $region21
    $region20: #{_forward_impl.3} parent=1 // pred_region
      _
    $region21: #{_forward_impl.3} parent=1 // pred_fallthru
      _
    %s25 = sld [smem:[#allocation2]]
    %v26 = vld [vmem:[%s1] sm:$0xf]
    %v27 = vld [vmem:[%s1 + $0x4] sm:$0xf]
    %v28 = vld [vmem:[%s2] sm:$0xf]
    %v29 = vld [vmem:[%s2 + $0x4] sm:$0xf]
    %v30 = vld [vmem:[%s2 + $0x8] sm:$0xf]
    %v31 = vld [vmem:[%s2 + $0xc] sm:$0xf]
    %v32 = vld [vmem:[%s2 + $0x10] sm:$0xf]
    %v33 = vld [vmem:[%s2 + $0x14] sm:$0xf]
    %v34 = vld [vmem:[%s2 + $0x18] sm:$0xf]
    %v35 = vld [vmem:[%s2 + $0x1c] sm:$0xf]
    %v36 = vld [vmem:[%s2 + $0x20] sm:$0xf]
    %v37 = vld [vmem:[%s2 + $0x24] sm:$0xf]
    %v38 = vld [vmem:[%s2 + $0x28] sm:$0xf]
    %v39 = vld [vmem:[%s2 + $0x2c] sm:$0xf]
    %v40 = vld [vmem:[%s2 + $0x30] sm:$0xf]
    %v41 = vld [vmem:[%s2 + $0x34] sm:$0xf]
    %v42 = vld [vmem:[%s2 + $0x38] sm:$0xf]
    %v43 = vld [vmem:[%s2 + $0x3c] sm:$0xf]
    %v44 = vld [vmem:[%s3] sm:$0x1]
    %v46 = vlaneseq
    %v47 = vshrl.u32 %v46, 7
    %v48 = vsub.s32 0, %v47
    %v49 = vrot.slane %v44, %v48
    %v53 = vunpack.c.l.b16 %v26
    %v54 = vunpack.c.l.b16 %v27
    %v55 = vpack.c.b16 %v54, %v53
    %v73 = vunpack.c.l.b16 %v28
    %v74 = vunpack.c.l.b16 %v29
    %v75 = vunpack.c.l.b16 %v30
    %v76 = vunpack.c.l.b16 %v31
    %v77 = vunpack.c.l.b16 %v32
    %v78 = vunpack.c.l.b16 %v33
    %v79 = vunpack.c.l.b16 %v34
    %v80 = vunpack.c.l.b16 %v35
    %v81 = vunpack.c.l.b16 %v36
    %v82 = vunpack.c.l.b16 %v37
    %v83 = vunpack.c.l.b16 %v38
    %v84 = vunpack.c.l.b16 %v39
    %v85 = vunpack.c.l.b16 %v40
    %v86 = vunpack.c.l.b16 %v41
    %v87 = vunpack.c.l.b16 %v42
    %v88 = vunpack.c.l.b16 %v43
    %v89 = vpack.c.b16 %v74, %v73
    %v90 = vpack.c.b16 %v76, %v75
    %v91 = vpack.c.b16 %v78, %v77
    %v92 = vpack.c.b16 %v80, %v79
    %v93 = vpack.c.b16 %v82, %v81
    %v94 = vpack.c.b16 %v84, %v83
    %v95 = vpack.c.b16 %v86, %v85
    %v96 = vpack.c.b16 %v88, %v87
    %105 = vmatprep.subr.bf16.mxu0 0
    %106 = vmatpush1.bf16.msra.mxu0 %v89
    %107 = vmatprep.subr.bf16.mxu0 0
    %108 = vmatpush1.bf16.msra.mxu0 %v90
    %109 = vmatprep.subr.bf16.mxu0 0
    %110 = vmatpush1.bf16.msra.mxu0 %v91
    %111 = vmatprep.subr.bf16.mxu0 0
    %112 = vmatpush1.bf16.msra.mxu0 %v92
    %113 = vmatprep.subr.bf16.mxu0 0
    %114 = vmatpush1.bf16.msra.mxu0 %v93
    %115 = vmatprep.subr.bf16.mxu0 0
    %116 = vmatpush1.bf16.msra.mxu0 %v94
    %117 = vmatprep.subr.bf16.mxu0 0
    %118 = vmatpush1.bf16.msra.mxu0 %v95
    %119 = vmatprep.subr.bf16.mxu0 0
    %120 = vmatpush1.bf16.msra.mxu0 %v96
    %121 = vmatprep.subr.bf16.mxu0 0
    %122 = vmatpush1.bf16.msra.mxu0 0
    %123 = vmatprep.subr.bf16.mxu0 0
    %124 = vmatpush1.bf16.msra.mxu0 0
    %125 = vmatprep.subr.bf16.mxu0 0
    %126 = vmatpush1.bf16.msra.mxu0 0
    %127 = vmatprep.subr.bf16.mxu0 0
    %128 = vmatpush1.bf16.msra.mxu0 0
    %129 = vmatprep.subr.bf16.mxu0 0
    %130 = vmatpush1.bf16.msra.mxu0 0
    %131 = vmatprep.subr.bf16.mxu0 0
    %132 = vmatpush1.bf16.msra.mxu0 0
    %133 = vmatprep.subr.bf16.mxu0 0
    %134 = vmatpush1.bf16.msra.mxu0 0
    %135 = vmatprep.subr.bf16.mxu0 0
    %136 = vmatpush1.bf16.msra.mxu0 0
    %137 = vmatprep.mubr.bf16.mxu0 0
    %138 = vmatmul.mubr.bf16.gmra.mrb[0].mxu0 %v55
    %v139 = vpop.f32.mrb[0].mxu0
    %v140 = vadd.f32 %v49, %v139
    %v141 = vpop.f32.mrb[0].mxu0
    %v142 = vpop.f32.mrb[0].mxu0
    %v143 = vadd.f32 %v49, %v142
    %v144 = vpop.f32.mrb[0].mxu0
    %145 = vdwg.mxu0
    %v146 = vmax.f32 %v140, 0.0
    %v147 = vmax.f32 %v143, 0.0
    %v148 = vand.u32 2147483647, %v140
    %v149 = vand.u32 2147483647, %v143
    %v150 = vsub.f32 0.0, %v148
    %v151 = vsub.f32 0.0, %v149
    %v152 = vmul.f32 %v150, 1.442695
    %v153 = vpow.pop %v152
    %v154 = vmul.f32 %v151, 1.442695
    %v155 = vpow.pop %v154
    %v156 = vadd.f32 %v153, 1.0
    %v157 = vadd.f32 %v155, 1.0
    %v158 = vlog2.pop %v156
    %v159 = vmul.f32 %v158, 0.6931472
    %v160 = vlog2.pop %v157
    %v161 = vmul.f32 %v160, 0.6931472
    %v162 = vadd.f32 %v146, %v159
    %v163 = vadd.f32 %v147, %v161
    %v164 = vlaneseq
    %v165 = vand.u32 %v164, 127
    %vm166 = vcmp.lt.s32.totalorder %v165, 4
    %v167 = vsel %vm166, 1, 0
    %v168 = vcvt.s32.f32 %v167
    %v169 = vlaneseq
    %v170 = vshrl.u32 %v169, 7
    %v171 = vadd.s32 %v170, 8
    %vm172 = vcmp.lt.s32.totalorder %v170, 2
    %vm173 = vcmp.lt.s32.totalorder %v171, 2
    %v174 = vsel %vm172, 1, 0
    %v175 = vsel %vm173, 1, 0
    %v176 = vcvt.s32.f32 %v174
    %v177 = vcvt.s32.f32 %v175
    %v178 = vmul.f32 %v162, %v168
    %v179 = vmul.f32 %v163, %v168
    %v180 = vld [vmem:[%s4] sm:$0xff]
    %v181 = vld [vmem:[%s4 + $0x8] sm:$0xff]
    %v182 = vsub.f32 1.0, %v180
    %v183 = vsub.f32 1.0, %v181
    %v184 = vadd.f32 %v178, 1.0
    %v185 = vadd.f32 %v179, 1.0
    %v186 = vmul.f32 %v178, %v178
    %v187 = vmul.f32 %v179, %v179
    %v188 = vmul.f32 %v186, 0.25
    %v189 = vmul.f32 %v187, 0.25
    %v190 = vmul.f32 %v178, 2.0
    %v191 = vmul.f32 %v179, 2.0
    %v192 = vadd.f32 %v188, %v190
    %v193 = vadd.f32 %v189, %v191
    %v194 = vadd.f32 %v192, 1.0
    %v195 = vadd.f32 %v193, 1.0
    %v196 = vmul.f32 %v178, %v182
    %v197 = vmul.f32 %v179, %v183
    %v198 = vadd.f32 %v196, 1.0
    %v199 = vadd.f32 %v197, 1.0
    %v200 = vmul.f32 %v192, %v182
    %v201 = vmul.f32 %v193, %v183
    %v202 = vadd.f32 %v200, 1.0
    %v203 = vadd.f32 %v201, 1.0
    %v204 = vrcp.pop %v184
    %v205 = vmul.f32 1.0, %v204
    %v206 = vrcp.pop %v185
    %v207 = vmul.f32 1.0, %v206
    %v208 = vadd.f32 %v205, 0.0
    %v209 = vadd.f32 %v207, 0.0
    %v210 = vadd.f32 %v184, 1.0
    %v211 = vadd.f32 %v185, 1.0
    %v212 = vrcp.pop %v210
    %v213 = vmul.f32 1.0, %v212
    %v214 = vrcp.pop %v211
    %v215 = vmul.f32 1.0, %v214
    %v216 = vadd.f32 %v208, %v213
    %v217 = vadd.f32 %v209, %v215
    %v218 = vadd.f32 %v210, 1.0
    %v219 = vadd.f32 %v211, 1.0
    %v220 = vrcp.pop %v218
    %v221 = vmul.f32 1.0, %v220
    %v222 = vrcp.pop %v219
    %v223 = vmul.f32 1.0, %v222
    %v224 = vadd.f32 %v216, %v221
    %v225 = vadd.f32 %v217, %v223
    %v226 = vadd.f32 %v218, 1.0
    %v227 = vadd.f32 %v219, 1.0
    %v228 = vrcp.pop %v226
    %v229 = vmul.f32 1.0, %v228
    %v230 = vrcp.pop %v227
    %v231 = vmul.f32 1.0, %v230
    %v232 = vadd.f32 %v224, %v229
    %v233 = vadd.f32 %v225, %v231
    %v234 = vadd.f32 %v226, 1.0
    %v235 = vadd.f32 %v227, 1.0
    %v236 = vrcp.pop %v234
    %v237 = vmul.f32 1.0, %v236
    %v238 = vrcp.pop %v235
    %v239 = vmul.f32 1.0, %v238
    %v240 = vadd.f32 %v232, %v237
    %v241 = vadd.f32 %v233, %v239
    %v242 = vadd.f32 %v234, 1.0
    %v243 = vadd.f32 %v235, 1.0
    %v244 = vrcp.pop %v242
    %v245 = vmul.f32 1.0, %v244
    %v246 = vrcp.pop %v243
    %v247 = vmul.f32 1.0, %v246
    %v248 = vadd.f32 %v240, %v245
    %v249 = vadd.f32 %v241, %v247
    %v250 = vadd.f32 %v242, 1.0
    %v251 = vadd.f32 %v243, 1.0
    %v252 = vrcp.pop %v250
    %v253 = vmul.f32 1.0, %v252
    %v254 = vrcp.pop %v251
    %v255 = vmul.f32 1.0, %v254
    %v256 = vadd.f32 %v248, %v253
    %v257 = vadd.f32 %v249, %v255
    %v258 = vadd.f32 %v250, 1.0
    %v259 = vadd.f32 %v251, 1.0
    %v260 = vrcp.pop %v258
    %v261 = vrcp.pop %v259
    %v262 = vmul.f32 %v260, %v260
    %v263 = vmul.f32 %v261, %v261
    %v264 = vlog2.pop %v258
    %v265 = vmul.f32 %v264, 0.6931472
    %v266 = vlog2.pop %v259
    %v267 = vmul.f32 %v266, 0.6931472
    %v268 = vmul.f32 %v260, 0.5
    %v269 = vmul.f32 %v261, 0.5
    %v270 = vsub.f32 %v265, %v268
    %v271 = vsub.f32 %v267, %v269
    %v272 = vmul.f32 %v262, 0.003968254
    %v273 = vmul.f32 %v263, 0.003968254
    %v274 = vsub.f32 0.008333334, %v272
    %v275 = vsub.f32 0.008333334, %v273
    %v276 = vmul.f32 %v262, %v274
    %v277 = vmul.f32 %v263, %v275
    %v278 = vsub.f32 0.083333336, %v276
    %v279 = vsub.f32 0.083333336, %v277
    %v280 = vmul.f32 %v262, %v278
    %v281 = vmul.f32 %v263, %v279
    %v282 = vsub.f32 %v270, %v280
    %v283 = vsub.f32 %v271, %v281
    %v284 = vsub.f32 %v282, %v256
    %v285 = vsub.f32 %v283, %v257
    %v286 = vmul.f32 %v184, %v210
    %v287 = vmul.f32 %v185, %v211
    %v288 = vmul.f32 %v286, %v218
    %v289 = vmul.f32 %v287, %v219
    %v290 = vmul.f32 %v288, %v226
    %v291 = vmul.f32 %v289, %v227
    %v292 = vmul.f32 %v290, %v234
    %v293 = vmul.f32 %v291, %v235
    %v294 = vmul.f32 %v292, %v242
    %v295 = vmul.f32 %v293, %v243
    %v296 = vmul.f32 %v294, %v250
    %v297 = vmul.f32 %v295, %v251
    %v298 = vmul.f32 %v260, 0.083333336
    %v299 = vmul.f32 %v261, 0.083333336
    %v300 = vmul.f32 %v262, %v260
    %v301 = vmul.f32 %v263, %v261
    %v302 = vmul.f32 %v300, 0.0027777778
    %v303 = vmul.f32 %v301, 0.0027777778
    %v304 = vsub.f32 %v298, %v302
    %v305 = vsub.f32 %v299, %v303
    %v306 = vmul.f32 %v262, %v262
    %v307 = vmul.f32 %v263, %v263
    %v308 = vmul.f32 %v306, %v260
    %v309 = vmul.f32 %v307, %v261
    %v310 = vmul.f32 %v308, 0.0007936508
    %v311 = vmul.f32 %v309, 0.0007936508
    %v312 = vadd.f32 %v304, %v310
    %v313 = vadd.f32 %v305, %v311
    %v314 = vsub.f32 %v258, 0.5
    %v315 = vsub.f32 %v259, 0.5
    %v316 = vmul.f32 %v314, %v265
    %v317 = vmul.f32 %v315, %v267
    %v318 = vsub.f32 %v316, %v258
    %v319 = vsub.f32 %v317, %v259
    %v320 = vadd.f32 %v318, 0.9189385
    %v321 = vadd.f32 %v319, 0.9189385
    %v322 = vadd.f32 %v320, %v312
    %v323 = vadd.f32 %v321, %v313
    %v324 = vlog2.pop %v296
    %v325 = vmul.f32 %v324, 0.6931472
    %v326 = vlog2.pop %v297
    %v327 = vmul.f32 %v326, 0.6931472
    %v328 = vsub.f32 %v322, %v325
    %v329 = vsub.f32 %v323, %v327
    %v330 = vrcp.pop %v194
    %v331 = vmul.f32 1.0, %v330
    %v332 = vrcp.pop %v195
    %v333 = vmul.f32 1.0, %v332
    %v334 = vadd.f32 %v331, 0.0
    %v335 = vadd.f32 %v333, 0.0
    %v336 = vadd.f32 %v194, 1.0
    %v337 = vadd.f32 %v195, 1.0
    %v338 = vrcp.pop %v336
    %v339 = vmul.f32 1.0, %v338
    %v340 = vrcp.pop %v337
    %v341 = vmul.f32 1.0, %v340
    %v342 = vadd.f32 %v334, %v339
    %v343 = vadd.f32 %v335, %v341
    %v344 = vadd.f32 %v336, 1.0
    %v345 = vadd.f32 %v337, 1.0
    %v346 = vrcp.pop %v344
    %v347 = vmul.f32 1.0, %v346
    %v348 = vrcp.pop %v345
    %v349 = vmul.f32 1.0, %v348
    %v350 = vadd.f32 %v342, %v347
    %v351 = vadd.f32 %v343, %v349
    %v352 = vadd.f32 %v344, 1.0
    %v353 = vadd.f32 %v345, 1.0
    %v354 = vrcp.pop %v352
    %v355 = vmul.f32 1.0, %v354
    %v356 = vrcp.pop %v353
    %v357 = vmul.f32 1.0, %v356
    %v358 = vadd.f32 %v350, %v355
    %v359 = vadd.f32 %v351, %v357
    %v360 = vadd.f32 %v352, 1.0
    %v361 = vadd.f32 %v353, 1.0
    %v362 = vrcp.pop %v360
    %v363 = vmul.f32 1.0, %v362
    %v364 = vrcp.pop %v361
    %v365 = vmul.f32 1.0, %v364
    %v366 = vadd.f32 %v358, %v363
    %v367 = vadd.f32 %v359, %v365
    %v368 = vadd.f32 %v360, 1.0
    %v369 = vadd.f32 %v361, 1.0
    %v370 = vrcp.pop %v368
    %v371 = vmul.f32 1.0, %v370
    %v372 = vrcp.pop %v369
    %v373 = vmul.f32 1.0, %v372
    %v374 = vadd.f32 %v366, %v371
    %v375 = vadd.f32 %v367, %v373
    %v376 = vadd.f32 %v368, 1.0
    %v377 = vadd.f32 %v369, 1.0
    %v378 = vrcp.pop %v376
    %v379 = vmul.f32 1.0, %v378
    %v380 = vrcp.pop %v377
    %v381 = vmul.f32 1.0, %v380
    %v382 = vadd.f32 %v374, %v379
    %v383 = vadd.f32 %v375, %v381
    %v384 = vadd.f32 %v376, 1.0
    %v385 = vadd.f32 %v377, 1.0
    %v386 = vrcp.pop %v384
    %v387 = vrcp.pop %v385
    %v388 = vmul.f32 %v386, %v386
    %v389 = vmul.f32 %v387, %v387
    %v390 = vlog2.pop %v384
    %v391 = vmul.f32 %v390, 0.6931472
    %v392 = vlog2.pop %v385
    %v393 = vmul.f32 %v392, 0.6931472
    %v394 = vmul.f32 %v386, 0.5
    %v395 = vmul.f32 %v387, 0.5
    %v396 = vsub.f32 %v391, %v394
    %v397 = vsub.f32 %v393, %v395
    %v398 = vmul.f32 %v388, 0.003968254
    %v399 = vmul.f32 %v389, 0.003968254
    %v400 = vsub.f32 0.008333334, %v398
    %v401 = vsub.f32 0.008333334, %v399
    %v402 = vmul.f32 %v388, %v400
    %v403 = vmul.f32 %v389, %v401
    %v404 = vsub.f32 0.083333336, %v402
    %v405 = vsub.f32 0.083333336, %v403
    %v406 = vmul.f32 %v388, %v404
    %v407 = vmul.f32 %v389, %v405
    %v408 = vsub.f32 %v396, %v406
    %v409 = vsub.f32 %v397, %v407
    %v410 = vsub.f32 %v408, %v382
    %v411 = vsub.f32 %v409, %v383
    %v412 = vmul.f32 %v194, %v336
    %v413 = vmul.f32 %v195, %v337
    %v414 = vmul.f32 %v412, %v344
    %v415 = vmul.f32 %v413, %v345
    %v416 = vmul.f32 %v414, %v352
    %v417 = vmul.f32 %v415, %v353
    %v418 = vmul.f32 %v416, %v360
    %v419 = vmul.f32 %v417, %v361
    %v420 = vmul.f32 %v418, %v368
    %v421 = vmul.f32 %v419, %v369
    %v422 = vmul.f32 %v420, %v376
    %v423 = vmul.f32 %v421, %v377
    %v424 = vmul.f32 %v386, 0.083333336
    %v425 = vmul.f32 %v387, 0.083333336
    %v426 = vmul.f32 %v388, %v386
    %v427 = vmul.f32 %v389, %v387
    %v428 = vmul.f32 %v426, 0.0027777778
    %v429 = vmul.f32 %v427, 0.0027777778
    %v430 = vsub.f32 %v424, %v428
    %v431 = vsub.f32 %v425, %v429
    %v432 = vmul.f32 %v388, %v388
    %v433 = vmul.f32 %v389, %v389
    %v434 = vmul.f32 %v432, %v386
    %v435 = vmul.f32 %v433, %v387
    %v436 = vmul.f32 %v434, 0.0007936508
    %v437 = vmul.f32 %v435, 0.0007936508
    %v438 = vadd.f32 %v430, %v436
    %v439 = vadd.f32 %v431, %v437
    %v440 = vsub.f32 %v384, 0.5
    %v441 = vsub.f32 %v385, 0.5
    %v442 = vmul.f32 %v440, %v391
    %v443 = vmul.f32 %v441, %v393
    %v444 = vsub.f32 %v442, %v384
    %v445 = vsub.f32 %v443, %v385
    %v446 = vadd.f32 %v444, 0.9189385
    %v447 = vadd.f32 %v445, 0.9189385
    %v448 = vadd.f32 %v446, %v438
    %v449 = vadd.f32 %v447, %v439
    %v450 = vlog2.pop %v422
    %v451 = vmul.f32 %v450, 0.6931472
    %v452 = vlog2.pop %v423
    %v453 = vmul.f32 %v452, 0.6931472
    %v454 = vsub.f32 %v448, %v451
    %v455 = vsub.f32 %v449, %v453
    %v456 = vmul.f32 %v184, %v168
    %v457 = vmul.f32 %v185, %v168
    %458 = vadd.xlane.f32.xlu0 %v456
    %v459 = vpop.xlane.xlu0 %458
    %460 = vadd.xlane.f32.xlu0 %v457
    %v461 = vpop.xlane.xlu0 %460
    %v462 = vmul.f32 %v198, %v168
    %v463 = vmul.f32 %v199, %v168
    %464 = vadd.xlane.f32.xlu0 %v462
    %v465 = vpop.xlane.xlu0 %464
    %466 = vadd.xlane.f32.xlu0 %v463
    %v467 = vpop.xlane.xlu0 %466
    %v468 = vmul.f32 %v194, %v168
    %v469 = vmul.f32 %v195, %v168
    %470 = vadd.xlane.f32.xlu0 %v468
    %v471 = vpop.xlane.xlu0 %470
    %472 = vadd.xlane.f32.xlu0 %v469
    %v473 = vpop.xlane.xlu0 %472
    %v474 = vmul.f32 %v202, %v168
    %v475 = vmul.f32 %v203, %v168
    %476 = vadd.xlane.f32.xlu0 %v474
    %v477 = vpop.xlane.xlu0 %476
    %478 = vadd.xlane.f32.xlu0 %v475
    %v479 = vpop.xlane.xlu0 %478
    %vm480 = vcmp.eq.s32.totalorder %v165, 0
    %v481 = vsel %vm480, %v459, 1.0
    %v482 = vsel %vm480, %v461, 1.0
    %vm483 = vcmp.eq.s32.totalorder %v165, 1
    %v484 = vsel %vm483, %v465, %v481
    %v485 = vsel %vm483, %v467, %v482
    %vm486 = vcmp.eq.s32.totalorder %v165, 2
    %v487 = vsel %vm486, %v471, %v484
    %v488 = vsel %vm486, %v473, %v485
    %vm489 = vcmp.eq.s32.totalorder %v165, 3
    %v490 = vsel %vm489, %v477, %v487
    %v491 = vsel %vm489, %v479, %v488
    %v492 = vrcp.pop %v490
    %v493 = vmul.f32 1.0, %v492
    %v494 = vrcp.pop %v491
    %v495 = vmul.f32 1.0, %v494
    %v496 = vadd.f32 %v493, 0.0
    %v497 = vadd.f32 %v495, 0.0
    %v498 = vadd.f32 %v490, 1.0
    %v499 = vadd.f32 %v491, 1.0
    %v500 = vrcp.pop %v498
    %v501 = vmul.f32 1.0, %v500
    %v502 = vrcp.pop %v499
    %v503 = vmul.f32 1.0, %v502
    %v504 = vadd.f32 %v496, %v501
    %v505 = vadd.f32 %v497, %v503
    %v506 = vadd.f32 %v498, 1.0
    %v507 = vadd.f32 %v499, 1.0
    %v508 = vrcp.pop %v506
    %v509 = vmul.f32 1.0, %v508
    %v510 = vrcp.pop %v507
    %v511 = vmul.f32 1.0, %v510
    %v512 = vadd.f32 %v504, %v509
    %v513 = vadd.f32 %v505, %v511
    %v514 = vadd.f32 %v506, 1.0
    %v515 = vadd.f32 %v507, 1.0
    %v516 = vrcp.pop %v514
    %v517 = vmul.f32 1.0, %v516
    %v518 = vrcp.pop %v515
    %v519 = vmul.f32 1.0, %v518
    %v520 = vadd.f32 %v512, %v517
    %v521 = vadd.f32 %v513, %v519
    %v522 = vadd.f32 %v514, 1.0
    %v523 = vadd.f32 %v515, 1.0
    %v524 = vrcp.pop %v522
    %v525 = vmul.f32 1.0, %v524
    %v526 = vrcp.pop %v523
    %v527 = vmul.f32 1.0, %v526
    %v528 = vadd.f32 %v520, %v525
    %v529 = vadd.f32 %v521, %v527
    %v530 = vadd.f32 %v522, 1.0
    %v531 = vadd.f32 %v523, 1.0
    %v532 = vrcp.pop %v530
    %v533 = vmul.f32 1.0, %v532
    %v534 = vrcp.pop %v531
    %v535 = vmul.f32 1.0, %v534
    %v536 = vadd.f32 %v528, %v533
    %v537 = vadd.f32 %v529, %v535
    %v538 = vadd.f32 %v530, 1.0
    %v539 = vadd.f32 %v531, 1.0
    %v540 = vrcp.pop %v538
    %v541 = vmul.f32 1.0, %v540
    %v542 = vrcp.pop %v539
    %v543 = vmul.f32 1.0, %v542
    %v544 = vadd.f32 %v536, %v541
    %v545 = vadd.f32 %v537, %v543
    %v546 = vadd.f32 %v538, 1.0
    %v547 = vadd.f32 %v539, 1.0
    %v548 = vrcp.pop %v546
    %v549 = vrcp.pop %v547
    %v550 = vmul.f32 %v548, %v548
    %v551 = vmul.f32 %v549, %v549
    %v552 = vlog2.pop %v546
    %v553 = vmul.f32 %v552, 0.6931472
    %v554 = vlog2.pop %v547
    %v555 = vmul.f32 %v554, 0.6931472
    %v556 = vmul.f32 %v548, 0.5
    %v557 = vmul.f32 %v549, 0.5
    %v558 = vsub.f32 %v553, %v556
    %v559 = vsub.f32 %v555, %v557
    %v560 = vmul.f32 %v550, 0.003968254
    %v561 = vmul.f32 %v551, 0.003968254
    %v562 = vsub.f32 0.008333334, %v560
    %v563 = vsub.f32 0.008333334, %v561
    %v564 = vmul.f32 %v550, %v562
    %v565 = vmul.f32 %v551, %v563
    %v566 = vsub.f32 0.083333336, %v564
    %v567 = vsub.f32 0.083333336, %v565
    %v568 = vmul.f32 %v550, %v566
    %v569 = vmul.f32 %v551, %v567
    %v570 = vsub.f32 %v558, %v568
    %v571 = vsub.f32 %v559, %v569
    %v572 = vsub.f32 %v570, %v544
    %v573 = vsub.f32 %v571, %v545
    %v574 = vsel %vm480, %v465, 1.0
    %v575 = vsel %vm480, %v467, 1.0
    %v576 = vsel %vm483, %v477, %v574
    %v577 = vsel %vm483, %v479, %v575
    %v578 = vadd.f32 %v576, 1.0
    %v579 = vadd.f32 %v577, 1.0
    %v580 = vmul.f32 %v576, %v578
    %v581 = vmul.f32 %v577, %v579
    %v582 = vadd.f32 %v578, 1.0
    %v583 = vadd.f32 %v579, 1.0
    %v584 = vmul.f32 %v580, %v582
    %v585 = vmul.f32 %v581, %v583
    %v586 = vadd.f32 %v582, 1.0
    %v587 = vadd.f32 %v583, 1.0
    %v588 = vmul.f32 %v584, %v586
    %v589 = vmul.f32 %v585, %v587
    %v590 = vadd.f32 %v586, 1.0
    %v591 = vadd.f32 %v587, 1.0
    %v592 = vmul.f32 %v588, %v590
    %v593 = vmul.f32 %v589, %v591
    %v594 = vadd.f32 %v590, 1.0
    %v595 = vadd.f32 %v591, 1.0
    %v596 = vmul.f32 %v592, %v594
    %v597 = vmul.f32 %v593, %v595
    %v598 = vadd.f32 %v594, 1.0
    %v599 = vadd.f32 %v595, 1.0
    %v600 = vmul.f32 %v596, %v598
    %v601 = vmul.f32 %v597, %v599
    %v602 = vadd.f32 %v598, 1.0
    %v603 = vadd.f32 %v599, 1.0
    %v604 = vrcp.pop %v602
    %v605 = vrcp.pop %v603
    %v606 = vmul.f32 %v604, %v604
    %v607 = vmul.f32 %v605, %v605
    %v608 = vmul.f32 %v604, 0.083333336
    %v609 = vmul.f32 %v605, 0.083333336
    %v610 = vmul.f32 %v606, %v604
    %v611 = vmul.f32 %v607, %v605
    %v612 = vmul.f32 %v610, 0.0027777778
    %v613 = vmul.f32 %v611, 0.0027777778
    %v614 = vsub.f32 %v608, %v612
    %v615 = vsub.f32 %v609, %v613
    %v616 = vmul.f32 %v606, %v606
    %v617 = vmul.f32 %v607, %v607
    %v618 = vmul.f32 %v616, %v604
    %v619 = vmul.f32 %v617, %v605
    %v620 = vmul.f32 %v618, 0.0007936508
    %v621 = vmul.f32 %v619, 0.0007936508
    %v622 = vadd.f32 %v614, %v620
    %v623 = vadd.f32 %v615, %v621
    %v624 = vsub.f32 %v602, 0.5
    %v625 = vsub.f32 %v603, 0.5
    %v626 = vlog2.pop %v602
    %v627 = vmul.f32 %v626, 0.6931472
    %v628 = vlog2.pop %v603
    %v629 = vmul.f32 %v628, 0.6931472
    %v630 = vmul.f32 %v624, %v627
    %v631 = vmul.f32 %v625, %v629
    %v632 = vsub.f32 %v630, %v602
    %v633 = vsub.f32 %v631, %v603
    %v634 = vadd.f32 %v632, 0.9189385
    %v635 = vadd.f32 %v633, 0.9189385
    %v636 = vadd.f32 %v634, %v622
    %v637 = vadd.f32 %v635, %v623
    %v638 = vlog2.pop %v600
    %v639 = vmul.f32 %v638, 0.6931472
    %v640 = vlog2.pop %v601
    %v641 = vmul.f32 %v640, 0.6931472
    %v642 = vsub.f32 %v636, %v639
    %v643 = vsub.f32 %v637, %v641
    %v644 = vsel %vm480, %v572, 0.0
    %v645 = vsel %vm480, %v573, 0.0
    %646 = vadd.xlane.f32.xlu0 %v644
    %v647 = vpop.xlane.xlu0 %646
    %648 = vadd.xlane.f32.xlu0 %v645
    %v649 = vpop.xlane.xlu0 %648
    %v650 = vsel %vm483, %v572, 0.0
    %v651 = vsel %vm483, %v573, 0.0
    %652 = vadd.xlane.f32.xlu0 %v650
    %v653 = vpop.xlane.xlu0 %652
    %654 = vadd.xlane.f32.xlu0 %v651
    %v655 = vpop.xlane.xlu0 %654
    %v656 = vsel %vm486, %v572, 0.0
    %v657 = vsel %vm486, %v573, 0.0
    %658 = vadd.xlane.f32.xlu0 %v656
    %v659 = vpop.xlane.xlu0 %658
    %660 = vadd.xlane.f32.xlu0 %v657
    %v661 = vpop.xlane.xlu0 %660
    %v662 = vsel %vm489, %v572, 0.0
    %v663 = vsel %vm489, %v573, 0.0
    %664 = vadd.xlane.f32.xlu0 %v662
    %v665 = vpop.xlane.xlu0 %664
    %666 = vadd.xlane.f32.xlu0 %v663
    %v667 = vpop.xlane.xlu0 %666
    %v668 = vsel %vm480, %v642, 0.0
    %v669 = vsel %vm480, %v643, 0.0
    %670 = vadd.xlane.f32.xlu0 %v668
    %v671 = vpop.xlane.xlu0 %670
    %672 = vadd.xlane.f32.xlu0 %v669
    %v673 = vpop.xlane.xlu0 %672
    %v674 = vsel %vm483, %v642, 0.0
    %v675 = vsel %vm483, %v643, 0.0
    %676 = vadd.xlane.f32.xlu0 %v674
    %v677 = vpop.xlane.xlu0 %676
    %678 = vadd.xlane.f32.xlu0 %v675
    %v679 = vpop.xlane.xlu0 %678
    %v680 = vsub.f32 %v647, %v284
    %v681 = vsub.f32 %v649, %v285
    %v682 = vmul.f32 %v180, %v680
    %v683 = vmul.f32 %v181, %v681
    %v684 = vmul.f32 %v682, %v168
    %v685 = vmul.f32 %v683, %v168
    %686 = vadd.xlane.f32.xlu0 %v684
    %v687 = vpop.xlane.xlu0 %686
    %688 = vadd.xlane.f32.xlu0 %v685
    %v689 = vpop.xlane.xlu0 %688
    %v690 = vsub.f32 %v284, %v653
    %v691 = vsub.f32 %v285, %v655
    %v692 = vmul.f32 %v196, %v690
    %v693 = vmul.f32 %v197, %v691
    %v694 = vmul.f32 %v692, %v168
    %v695 = vmul.f32 %v693, %v168
    %696 = vadd.xlane.f32.xlu0 %v694
    %v697 = vpop.xlane.xlu0 %696
    %698 = vadd.xlane.f32.xlu0 %v695
    %v699 = vpop.xlane.xlu0 %698
    %v700 = vmul.f32 %v182, %v328
    %v701 = vmul.f32 %v183, %v329
    %v702 = vmul.f32 %v700, %v168
    %v703 = vmul.f32 %v701, %v168
    %704 = vadd.xlane.f32.xlu0 %v702
    %v705 = vpop.xlane.xlu0 %704
    %706 = vadd.xlane.f32.xlu0 %v703
    %v707 = vpop.xlane.xlu0 %706
    %v708 = vadd.f32 %v697, %v671
    %v709 = vadd.f32 %v699, %v673
    %v710 = vsub.f32 %v708, %v705
    %v711 = vsub.f32 %v709, %v707
    %v712 = vsub.f32 %v710, 1.7917595
    %v713 = vsub.f32 %v711, 1.7917595
    %v714 = vstv %s25
    %v715 = vmul.f32 %v714, %v712
    %v716 = vmul.f32 %v714, %v713
    %v717 = vadd.f32 %v687, %v715
    %v718 = vadd.f32 %v689, %v716
    %v719 = vsub.f32 %v659, %v410
    %v720 = vsub.f32 %v661, %v411
    %v721 = vmul.f32 %v180, %v719
    %v722 = vmul.f32 %v181, %v720
    %v723 = vmul.f32 %v721, %v168
    %v724 = vmul.f32 %v722, %v168
    %725 = vadd.xlane.f32.xlu0 %v723
    %v726 = vpop.xlane.xlu0 %725
    %727 = vadd.xlane.f32.xlu0 %v724
    %v728 = vpop.xlane.xlu0 %727
    %v729 = vsub.f32 %v410, %v665
    %v730 = vsub.f32 %v411, %v667
    %v731 = vmul.f32 %v200, %v729
    %v732 = vmul.f32 %v201, %v730
    %v733 = vmul.f32 %v731, %v168
    %v734 = vmul.f32 %v732, %v168
    %735 = vadd.xlane.f32.xlu0 %v733
    %v736 = vpop.xlane.xlu0 %735
    %737 = vadd.xlane.f32.xlu0 %v734
    %v738 = vpop.xlane.xlu0 %737
    %v739 = vmul.f32 %v182, %v454
    %v740 = vmul.f32 %v183, %v455
    %v741 = vmul.f32 %v739, %v168
    %v742 = vmul.f32 %v740, %v168
    %743 = vadd.xlane.f32.xlu0 %v741
    %v744 = vpop.xlane.xlu0 %743
    %745 = vadd.xlane.f32.xlu0 %v742
    %v746 = vpop.xlane.xlu0 %745
    %v747 = vadd.f32 %v736, %v677
    %v748 = vadd.f32 %v738, %v679
    %v749 = vsub.f32 %v747, %v744
    %v750 = vsub.f32 %v748, %v746
    %v751 = vsub.f32 %v749, 1.7917595
    %v752 = vsub.f32 %v750, 1.7917595
    %v753 = vmul.f32 %v714, %v751
    %v754 = vmul.f32 %v714, %v752
    %v755 = vadd.f32 %v726, %v753
    %v756 = vadd.f32 %v728, %v754
    %v757 = vmul.f32 %v717, 2.0
    %v758 = vmul.f32 %v718, 2.0
    %v759 = vadd.f32 %v757, %v755
    %v760 = vadd.f32 %v758, %v756
    %v761 = vmul.f32 %v759, %v176
    %v762 = vmul.f32 %v760, %v177
    %v763 = vadd.f32 %v761, %v762
    %v764 = vrot.slane %v763, 4
    %v765 = vadd.f32 %v763, %v764
    %v766 = vrot.slane %v765, 2
    %v767 = vadd.f32 %v765, %v766
    %v768 = vrot.slane %v767, 1
    %v769 = vadd.f32 %v767, %v768
    %v770 = vmul.f32 %v769, 0.5
    %vm771 = vcmask 0
    %772 = vst.msk [vmem:[#allocation3] sm:$0x1] %vm771, %v770
    %v773 = vmul.f32 %v192, 0.5
    %v774 = vmul.f32 %v193, 0.5
    %v775 = vtanh.pop %v773
    %v776 = vtanh.pop %v774
    %v777 = vadd.f32 %v775, 1.0
    %v778 = vadd.f32 %v776, 1.0
    %v779 = vmul.f32 %v777, 0.5
    %v780 = vmul.f32 %v778, 0.5
    %781 = vst [vmem:[%s6] sm:$0xff] %v779
    %782 = vst [vmem:[%s6 + $0x8] sm:$0xff] %v780
    // Predicated region
    $region22: #{_forward_impl.3} parent=1 // pred_check
      _
    $region23: #{_forward_impl.3} parent=1 // pred_check_branch
      %784 = sbr.rel (0) target = $region25
    $region24: #{_forward_impl.3} parent=1 // pred_region
      %s786 = ssub.s32 16, 16
      %787 = vsyncadd [#allocation4], %s786
      %s789 = sshll.u32 [#allocation3], 4
      %s790 = int_to_ptr.vmem [resolvable:$true] %s789
      %792 = dma.vmem_to_hbm [thread:$0]  %s790, 16, %s5, [#allocation4]
    $region25: #{_forward_impl.3} parent=1 // pred_fallthru
      _
    // Predicated region
    $region26: #{_forward_impl.3} parent=1 // pred_check
      _
    $region27: #{_forward_impl.3} parent=1 // pred_check_branch
      %794 = sbr.rel (0) target = $region29
    $region28: #{_forward_impl.3} parent=1 // pred_region
      _
    $region29: #{_forward_impl.3} parent=1 // pred_fallthru
      _
    // Predicated region
    $region30: #{_forward_impl.3} parent=1 // pred_check
      _
    $region31: #{_forward_impl.3} parent=1 // pred_check_branch
      %796 = sbr.rel (0) target = $region33
    $region32: #{_forward_impl.3} parent=1 // pred_region
      %797 = dma.done [#allocation4], 16
    $region33: #{_forward_impl.3} parent=1 // pred_fallthru
      _
    // Predicated region
    $region34: #{_forward_impl.3} parent=1 // pred_check
      _
    $region35: #{_forward_impl.3} parent=1 // pred_check_branch
      %799 = sbr.rel (0) target = $region37
    $region36: #{_forward_impl.3} parent=1 // pred_region
      _
    $region37: #{_forward_impl.3} parent=1 // pred_fallthru
      _
    %800 = vsyncpa [#allocation4], 1

</llo_original>
